<compile_context>
chip_gen: v6e
topology: v6e:2x2x1
jax: 0.10.0
libtpu: 0.0.40
codegen_flags: <defaults>
</compile_context>

<pallas_src>
import functools

import numpy as np
import jax
import jax.numpy as jnp
from jax.experimental import pallas as pl
from jax.experimental.pallas import tpu as pltpu


def _round_up(x, m):
    return (x + m - 1) // m * m


def _vmem_limit_bytes():
    # 64 MiB on v5e/v6e (128 MiB physical), 32 MiB on v7x (64 MiB physical).
    try:
        cap = int(pltpu.get_tpu_info().vmem_capacity_bytes)
        return int(min(cap // 2, 64 * 1024 * 1024))
    except Exception:
        return 32 * 1024 * 1024


_VMEM_LIMIT = _vmem_limit_bytes()
_TM_TARGET = 1024 if _VMEM_LIMIT >= 64 * 1024 * 1024 else 512


# ----------------------------------------------------------------------------
# Kernel 1: conv1x1 + folded-BN bias + ReLU  (row-tiled MXU matmul, bf16 out)
# ----------------------------------------------------------------------------
def _matmul_bias_relu_kernel(x_ref, w_ref, b_ref, o_ref):
    acc = jnp.dot(x_ref[...], w_ref[...], preferred_element_type=jnp.float32)
    acc = jnp.maximum(acc + b_ref[...], 0.0)
    o_ref[...] = acc.astype(o_ref.dtype)


def conv1x1_bn_relu(x2d, w, bias, *, out_dtype=jnp.bfloat16, tm_target=_TM_TARGET):
    """x2d: (M, K) bf16, w: (K, C) bf16, bias: (1, C) f32 -> (M, C) out_dtype."""
    M, K = x2d.shape
    C = w.shape[1]
    # >=2 grid steps when possible (megacore), tile multiple of 8, pad rows.
    tm = max(8, min(tm_target, _round_up(-(-M // 2), 8)))
    Mp = _round_up(M, tm)
    if Mp != M:
        x2d = jnp.pad(x2d, ((0, Mp - M), (0, 0)))
    out = pl.pallas_call(
        _matmul_bias_relu_kernel,
        out_shape=jax.ShapeDtypeStruct((Mp, C), out_dtype),
        grid=(Mp // tm,),
        in_specs=[
            pl.BlockSpec((tm, K), lambda i: (i, 0)),
            pl.BlockSpec((K, C), lambda i: (0, 0)),
            pl.BlockSpec((1, C), lambda i: (0, 0)),
        ],
        out_specs=pl.BlockSpec((tm, C), lambda i: (i, 0)),
        compiler_params=pltpu.CompilerParams(
            dimension_semantics=("parallel",),
            vmem_limit_bytes=_VMEM_LIMIT),
    )(x2d, w, bias)
    return out[:M] if Mp != M else out


# ----------------------------------------------------------------------------
# Kernel 2: fused grouped-conv3x3 + BN2 + ReLU + SE (pool/fc/relu/fc/sigmoid,
#           excite) + [conv3+bn3 | shortcut conv+bn] stacked dot + bias + ReLU.
# One grid step per image; tap windows are unit-stride slices of the (poly-
# phase-split, padded) y1 slabs, concatenated along K for one long-K MXU dot.
# ----------------------------------------------------------------------------
def _block_tail_kernel(*refs, taps, n_slabs, Ho, Wo):
    slab_refs = refs[:n_slabs]
    (w2_ref, b2_ref, se1w_ref, se1b_ref, se2w_ref, se2b_ref,
     xs_ref, w3_ref, b3_ref, o_ref) = refs[n_slabs:]

    slabs = [r[0] for r in slab_refs]                      # (Ph, Pw, Cb) bf16
    cols = []
    for (si, qh, qw) in taps:
        t = slabs[si][qh:qh + Ho, qw:qw + Wo, :]           # unit-stride window
        cols.append(t.reshape(Ho * Wo, t.shape[-1]))
    patches = jnp.concatenate(cols, axis=-1)               # (HoWo, 9*Cb) bf16

    # grouped conv2 (block-diagonal dense weight) + bn2 + relu, f32 accumulate
    y2 = jnp.dot(patches, w2_ref[...], preferred_element_type=jnp.float32)
    y2 = jnp.maximum(y2 + b2_ref[...], 0.0)                # (HoWo, Cb) f32

    # SE: squeeze -> fc -> relu -> fc -> sigmoid -> excite
    m = jnp.mean(y2, axis=0, keepdims=True)                # (1, Cb)
    s = jnp.dot(m, se1w_ref[...], preferred_element_type=jnp.float32) + se1b_ref[...]
    s = jnp.maximum(s, 0.0)
    s = jnp.dot(s, se2w_ref[...], preferred_element_type=jnp.float32) + se2b_ref[...]
    gate = jax.nn.sigmoid(s)                               # (1, Cb)
    h = (y2 * gate).astype(jnp.bfloat16)                   # (HoWo, Cb)

    # conv3+bn3 and shortcut conv+bn as one stacked-K dot, + bias, relu
    hk = jnp.concatenate([h, xs_ref[0]], axis=-1)          # (HoWo, Cb+Cin)
    acc = jnp.dot(hk, w3_ref[...], preferred_element_type=jnp.float32) + b3_ref[...]
    o_ref[0] = jnp.maximum(acc, 0.0).astype(o_ref.dtype)


def block_tail_fused(slabs, taps, xs, w2, b2, se1w, se1b, se2w, se2b,
                     w3cat, b3, Ho, Wo, out_dtype=jnp.bfloat16):
    N = xs.shape[0]
    Cb = w2.shape[1]
    Cin = xs.shape[2]
    Cout = w3cat.shape[1]
    HWo = Ho * Wo
    n_slabs = len(slabs)
    slab_specs = [pl.BlockSpec((1,) + s.shape[1:], lambda n: (n, 0, 0, 0))
                  for s in slabs]
    kernel = functools.partial(_block_tail_kernel, taps=tuple(taps),
                               n_slabs=n_slabs, Ho=Ho, Wo=Wo)
    return pl.pallas_call(
        kernel,
        out_shape=jax.ShapeDtypeStruct((N, HWo, Cout), out_dtype),
        grid=(N,),
        in_specs=slab_specs + [
            pl.BlockSpec(w2.shape, lambda n: (0, 0)),
            pl.BlockSpec((1, Cb), lambda n: (0, 0)),
            pl.BlockSpec(se1w.shape, lambda n: (0, 0)),
            pl.BlockSpec((1, se1w.shape[1]), lambda n: (0, 0)),
            pl.BlockSpec(se2w.shape, lambda n: (0, 0)),
            pl.BlockSpec((1, Cb), lambda n: (0, 0)),
            pl.BlockSpec((1, HWo, Cin), lambda n: (n, 0, 0)),
            pl.BlockSpec(w3cat.shape, lambda n: (0, 0)),
            pl.BlockSpec((1, Cout), lambda n: (0, 0)),
        ],
        out_specs=pl.BlockSpec((1, HWo, Cout), lambda n: (n, 0, 0)),
        compiler_params=pltpu.CompilerParams(
            dimension_semantics=("parallel",),
            vmem_limit_bytes=_VMEM_LIMIT),
    )(*slabs, w2, b2, se1w, se1b, se2w, se2b, xs, w3cat, b3)


# ----------------------------------------------------------------------------
# One-time parameter preparation: BN folding into weights, bf16 casts, stacking
# ----------------------------------------------------------------------------
def prepare_block_params(p, eps=1e-5):
    bf16, f32 = jnp.bfloat16, jnp.float32

    def fold(g, b, m, v):
        s = g / jnp.sqrt(v + eps)
        return s, b - m * s

    Cb = p["w1"].shape[0]
    Cout = p["w3"].shape[0]
    Wse = p["se1_w"].shape[0]

    s1, c1 = fold(p["g1"], p["b1"], p["m1"], p["v1"])
    s2, c2 = fold(p["g2"], p["b2"], p["m2"], p["v2"])
    s3, c3 = fold(p["g3"], p["b3"], p["m3"], p["v3"])
    ssc, csc = fold(p["gsc"], p["bsc"], p["msc"], p["vsc"])

    q = {}
    q["w1f"] = (p["w1"][:, :, 0, 0].T * s1[None, :]).astype(bf16)
    q["c1"] = c1.reshape(1, Cb).astype(f32)
    q["w2f"] = (p["w2_dense"].reshape(9 * Cb, Cb) * s2[None, :]).astype(bf16)
    q["c2"] = c2.reshape(1, Cb).astype(f32)
    q["se1w"] = p["se1_w"][:, :, 0, 0].T.astype(f32)
    q["se1b"] = p["se1_b"].reshape(1, Wse).astype(f32)
    q["se2w"] = p["se2_w"][:, :, 0, 0].T.astype(f32)
    q["se2b"] = p["se2_b"].reshape(1, Cb).astype(f32)
    w3f = p["w3"][:, :, 0, 0].T * s3[None, :]
    wscf = p["wsc"][:, :, 0, 0].T * ssc[None, :]
    q["w3cat"] = jnp.concatenate([w3f, wscf], axis=0).astype(bf16)  # (Cb+Cin, Cout)
    q["b3"] = (c3 + csc).reshape(1, Cout).astype(f32)
    return q


# ----------------------------------------------------------------------------
# Full Block forward (Pallas path).  Glue (layout, padding, polyphase split,
# strided shortcut slice) is plain XLA; all matmuls / reductions / elementwise
# hot paths run in the two kernels above.
# ----------------------------------------------------------------------------
@functools.partial(jax.jit, static_argnames=("stride",))
def block_forward_pallas(x_nchw, q, *, stride):
    bf16 = jnp.bfloat16
    N, Cin, H, W = x_nchw.shape
    Cb = q["w1f"].shape[1]
    Cout = q["w3cat"].shape[1]

    Ho = (H + 2 - 3) // stride + 1
    Wo = (W + 2 - 3) // stride + 1

    x = jnp.transpose(x_nchw.astype(bf16), (0, 2, 3, 1))      # NHWC bf16

    # conv1 (1x1) + bn1 + relu
    y1 = conv1x1_bn_relu(x.reshape(N * H * W, Cin), q["w1f"], q["c1"])
    y1 = y1.reshape(N, H, W, Cb)

    # Pad once; for stride 2 split into 4 polyphase slabs so the fused kernel
    # only needs UNIT-stride tap windows (no HBM im2col materialization).
    if stride == 1:
        xp = jnp.pad(y1, ((0, 0), (1, 1), (1, 1), (0, 0)))
        slabs = [xp]
        taps = [(0, kh, kw) for kh in range(3) for kw in range(3)]
    elif stride == 2:
        Hp = max(H + 2, 2 * Ho + 2)
        Wp = max(W + 2, 2 * Wo + 2)
        xp = jnp.pad(y1, ((0, 0), (1, Hp - H - 1), (1, Wp - W - 1), (0, 0)))
        slabs = [xp[:, rh::2, rw::2, :] for rh in range(2) for rw in range(2)]
        taps = [((kh % 2) * 2 + (kw % 2), kh // 2, kw // 2)
                for kh in range(3) for kw in range(3)]
    else:
        raise NotImplementedError("stride must be 1 or 2")

    # Shortcut conv's strided input view (1x1 conv stride s, no padding).
    xs = x[:, 0:(Ho - 1) * stride + 1:stride,
             0:(Wo - 1) * stride + 1:stride, :].reshape(N, Ho * Wo, Cin)

    out = block_tail_fused(slabs, taps, xs,
                           q["w2f"], q["c2"],
                           q["se1w"], q["se1b"], q["se2w"], q["se2b"],
                           q["w3cat"], q["b3"], Ho, Wo)
    out = out.reshape(N, Ho, Wo, Cout)
    # NHWC->NCHW only at the model boundary (done in bf16), then widen.
    return jnp.transpose(out, (0, 3, 1, 2)).astype(jnp.float32)


# ----------------------------------------------------------------------------
# Pure-JAX (lax.conv) reference for correctness checking
# ----------------------------------------------------------------------------
def block_forward_reference(x, p, stride, groups, eps=1e-5):
    dn = ("NCHW", "OIHW", "NCHW")

    def bn(y, g, b, m, v):
        g, b, m, v = (t[None, :, None, None] for t in (g, b, m, v))
        return (y - m) / jnp.sqrt(v + eps) * g + b

    y = jax.lax.conv_general_dilated(x, p["w1"], (1, 1), "VALID",
                                     dimension_numbers=dn)
    y = jax.nn.relu(bn(y, p["g1"], p["b1"], p["m1"], p["v1"]))
    y = jax.lax.conv_general_dilated(y, p["w2"], (stride, stride),
                                     ((1, 1), (1, 1)), dimension_numbers=dn,
                                     feature_group_count=groups)
    y = jax.nn.relu(bn(y, p["g2"], p["b2"], p["m2"], p["v2"]))
    pooled = jnp.mean(y, axis=(2, 3), keepdims=True)
    s = jax.lax.conv_general_dilated(pooled, p["se1_w"], (1, 1), "VALID",
                                     dimension_numbers=dn)
    s = jax.nn.relu(s + p["se1_b"][None, :, None, None])
    s = jax.lax.conv_general_dilated(s, p["se2_w"], (1, 1), "VALID",
                                     dimension_numbers=dn)
    s = jax.nn.sigmoid(s + p["se2_b"][None, :, None, None])
    y = y * s
    y = jax.lax.conv_general_dilated(y, p["w3"], (1, 1), "VALID",
                                     dimension_numbers=dn)
    y = bn(y, p["g3"], p["b3"], p["m3"], p["v3"])
    sc = jax.lax.conv_general_dilated(x, p["wsc"], (stride, stride), "VALID",
                                      dimension_numbers=dn)
    sc = bn(sc, p["gsc"], p["bsc"], p["msc"], p["vsc"])
    return jax.nn.relu(y + sc)


# ----------------------------------------------------------------------------
# Deterministic parameter construction
# ----------------------------------------------------------------------------
def make_params(key, w_in, w_out, w_b, group_width, w_se):
    groups = w_b // group_width
    ks = iter(jax.random.split(key, 32))

    def nrm(shape, scale=0.1):
        return scale * jax.random.normal(next(ks), shape, jnp.float32)

    def pos(shape):
        return jax.random.uniform(next(ks), shape, jnp.float32, 0.5, 1.5)

    def bn(c):
        return pos((c,)), nrm((c,)), nrm((c,)), pos((c,))  # gamma, beta, mean, var

    p = {}
    p["w1"] = nrm((w_b, w_in, 1, 1))
    p["g1"], p["b1"], p["m1"], p["v1"] = bn(w_b)
    p["w2"] = nrm((w_b, group_width, 3, 3))
    p["g2"], p["b2"], p["m2"], p["v2"] = bn(w_b)
    p["se1_w"] = nrm((w_se, w_b, 1, 1))
    p["se1_b"] = nrm((w_se,))
    p["se2_w"] = nrm((w_b, w_se, 1, 1))
    p["se2_b"] = nrm((w_b,))
    p["w3"] = nrm((w_out, w_b, 1, 1))
    p["g3"], p["b3"], p["m3"], p["v3"] = bn(w_out)
    p["wsc"] = nrm((w_out, w_in, 1, 1))
    p["gsc"], p["bsc"], p["msc"], p["vsc"] = bn(w_out)

    # Dense block-diagonal per-tap weights for the grouped 3x3 conv:
    # dense[k, in_ch, out_ch] so that patch(M,Cb) @ dense[k] == grouped conv tap.
    # (Reshaped to (9*Cb, Cb) for the single long-K matmul in the kernel.)
    w2_np = np.asarray(p["w2"])
    out_per_group = w_b // groups
    assert out_per_group == group_width, \
        "dense grouped-conv weight assumes in-per-group == out-per-group"
    dense = np.zeros((9, w_b, w_b), np.float32)
    for g in range(groups):
        oc = slice(g * out_per_group, (g + 1) * out_per_group)
        for kh in range(3):
            for kw in range(3):
                dense[kh * 3 + kw, oc, oc] = w2_np[oc, :, kh, kw].T
    p["w2_dense"] = jnp.asarray(dense)
    return p


if __name__ == "__main__":
    # Block(w_in=64, w_out=128, stride=2, group_width=32,
    #       bottleneck_ratio=1.0, se_ratio=0.25)
    N, w_in, H, W = 2, 64, 8, 8
    w_out, stride, group_width = 128, 2, 32
    bottleneck_ratio, se_ratio = 1.0, 0.25
    w_b = int(round(w_out * bottleneck_ratio))
    groups = w_b // group_width
    w_se = int(round(w_in * se_ratio))

    key = jax.random.PRNGKey(0)
    kp, kx = jax.random.split(key)
    params = make_params(kp, w_in, w_out, w_b, group_width, w_se)
    prepared = prepare_block_params(params)          # fold BN / cast once
    x = 0.5 * jax.random.normal(kx, (N, w_in, H, W), jnp.float32)

    out = jax.block_until_ready(block_forward_pallas(x, prepared, stride=stride))
    ref = jax.block_until_ready(block_forward_reference(x, params, stride, groups))

    assert out.shape == ref.shape == (N, w_out, H // stride, W // stride)
    # Kernels feed the MXU in bf16 (f32 accumulate) and store bf16 activations,
    # so compare with a bf16-level tolerance against the f32 lax.conv reference.
    np.testing.assert_allclose(np.asarray(out), np.asarray(ref),
                               atol=3e-2, rtol=3e-2)
    print("KERNEL_OK")
</pallas_src>

<mosaic_0001>
module attributes {stable_mosaic.version = 11 : i64} {
  func.func @_matmul_bias_relu_kernel(%arg0: i32, %arg1: memref<64x64xbf16, #tpu.memory_space<vmem>>, %arg2: memref<64x128xbf16, #tpu.memory_space<vmem>>, %arg3: memref<1x128xf32, #tpu.memory_space<vmem>>, %arg4: memref<64x128xbf16, #tpu.memory_space<vmem>>) attributes {dimension_semantics = [#tpu.dimension_semantics<parallel>], iteration_bounds = array<i64: 2>, scalar_prefetch = 0 : i64, scratch_operands = 0 : i64, tpu.core_type = #tpu.core_type<tc>, window_params = [{transform_indices = @transform_0, window_bounds = array<i64: 64, 64>}, {pipeline_mode = #tpu.pipeline_mode<synchronous>, transform_indices = @transform_1, window_bounds = array<i64: 64, 128>}, {pipeline_mode = #tpu.pipeline_mode<synchronous>, transform_indices = @transform_2, window_bounds = array<i64: 1, 128>}, {transform_indices = @transform_3, window_bounds = array<i64: 64, 128>}]} {
    %c0 = arith.constant 0 : index
    %c0_0 = arith.constant 0 : index
    %0 = vector.load %arg1[%c0, %c0_0] : memref<64x64xbf16, #tpu.memory_space<vmem>>, vector<64x64xbf16>
    %c0_1 = arith.constant 0 : index
    %c0_2 = arith.constant 0 : index
    %1 = vector.load %arg2[%c0_1, %c0_2] : memref<64x128xbf16, #tpu.memory_space<vmem>>, vector<64x128xbf16>
    %cst = arith.constant dense<0.000000e+00> : vector<64x128xf32>
    %2 = tpu.matmul %0, %1, %cst {dimension_numbers = #tpu.dot_dimension_numbers<[1], [0], [0], [1], [0, 0, 1, 1], [], []>} : vector<64x64xbf16>, vector<64x128xbf16>, vector<64x128xf32> -> vector<64x128xf32>
    %c0_3 = arith.constant 0 : index
    %c0_4 = arith.constant 0 : index
    %3 = vector.load %arg3[%c0_3, %c0_4] : memref<1x128xf32, #tpu.memory_space<vmem>>, vector<1x128xf32>
    %4 = vector.broadcast %3 : vector<1x128xf32> to vector<64x128xf32>
    %5 = arith.addf %2, %4 : vector<64x128xf32>
    %cst_5 = arith.constant 0.000000e+00 : f32
    %6 = vector.broadcast %cst_5 : f32 to vector<64x128xf32>
    %7 = arith.maximumf %5, %6 : vector<64x128xf32>
    %8 = arith.truncf %7 : vector<64x128xf32> to vector<64x128xbf16>
    %c0_6 = arith.constant 0 : index
    %c0_7 = arith.constant 0 : index
    %9 = vector.load %arg4[%c0_6, %c0_7] : memref<64x128xbf16, #tpu.memory_space<vmem>>, vector<64x128xbf16>
    tpu.vector_store %arg4[%c0_6, %c0_7], %8 {strides = array<i32>} : memref<64x128xbf16, #tpu.memory_space<vmem>>, vector<64x128xbf16>,
    return
  }
  func.func @transform_0(%arg0: i32) -> (i32, i32) {
    %c0_i32 = arith.constant 0 : i32
    %c0_i32_0 = arith.constant 0 : i32
    return %arg0, %c0_i32 : i32, i32
  }
  func.func @transform_1(%arg0: i32) -> (i32, i32) {
    %c0_i32 = arith.constant 0 : i32
    %c0_i32_0 = arith.constant 0 : i32
    %c0_i32_1 = arith.constant 0 : i32
    return %c0_i32, %c0_i32_0 : i32, i32
  }
  func.func @transform_2(%arg0: i32) -> (i32, i32) {
    %c0_i32 = arith.constant 0 : i32
    %c0_i32_0 = arith.constant 0 : i32
    %c0_i32_1 = arith.constant 0 : i32
    return %c0_i32, %c0_i32_0 : i32, i32
  }
  func.func @transform_3(%arg0: i32) -> (i32, i32) {
    %c0_i32 = arith.constant 0 : i32
    %c0_i32_0 = arith.constant 0 : i32
    return %arg0, %c0_i32 : i32, i32
  }
}

module attributes {stable_mosaic.version = 11 : i64} {
  func.func @_block_tail_kernel(%arg0: i32, %arg1: memref<1x5x5x128xbf16, #tpu.memory_space<vmem>>, %arg2: memref<1x5x5x128xbf16, #tpu.memory_space<vmem>>, %arg3: memref<1x5x5x128xbf16, #tpu.memory_space<vmem>>, %arg4: memref<1x5x5x128xbf16, #tpu.memory_space<vmem>>, %arg5: memref<1152x128xbf16, #tpu.memory_space<vmem>>, %arg6: memref<1x128xf32, #tpu.memory_space<vmem>>, %arg7: memref<128x16xf32, #tpu.memory_space<vmem>>, %arg8: memref<1x16xf32, #tpu.memory_space<vmem>>, %arg9: memref<16x128xf32, #tpu.memory_space<vmem>>, %arg10: memref<1x128xf32, #tpu.memory_space<vmem>>, %arg11: memref<1x16x64xbf16, #tpu.memory_space<vmem>>, %arg12: memref<192x128xbf16, #tpu.memory_space<vmem>>, %arg13: memref<1x128xf32, #tpu.memory_space<vmem>>, %arg14: memref<1x16x128xbf16, #tpu.memory_space<vmem>>) attributes {dimension_semantics = [#tpu.dimension_semantics<parallel>], iteration_bounds = array<i64: 2>, scalar_prefetch = 0 : i64, scratch_operands = 0 : i64, tpu.core_type = #tpu.core_type<tc>, window_params = [{transform_indices = @transform_0, window_bounds = array<i64: 1, 5, 5, 128>}, {transform_indices = @transform_1, window_bounds = array<i64: 1, 5, 5, 128>}, {transform_indices = @transform_2, window_bounds = array<i64: 1, 5, 5, 128>}, {transform_indices = @transform_3, window_bounds = array<i64: 1, 5, 5, 128>}, {pipeline_mode = #tpu.pipeline_mode<synchronous>, transform_indices = @transform_4, window_bounds = array<i64: 1152, 128>}, {pipeline_mode = #tpu.pipeline_mode<synchronous>, transform_indices = @transform_5, window_bounds = array<i64: 1, 128>}, {pipeline_mode = #tpu.pipeline_mode<synchronous>, transform_indices = @transform_6, window_bounds = array<i64: 128, 16>}, {pipeline_mode = #tpu.pipeline_mode<synchronous>, transform_indices = @transform_7, window_bounds = array<i64: 1, 16>}, {pipeline_mode = #tpu.pipeline_mode<synchronous>, transform_indices = @transform_8, window_bounds = array<i64: 16, 128>}, {pipeline_mode = #tpu.pipeline_mode<synchronous>, transform_indices = @transform_9, window_bounds = array<i64: 1, 128>}, {transform_indices = @transform_10, window_bounds = array<i64: 1, 16, 64>}, {pipeline_mode = #tpu.pipeline_mode<synchronous>, transform_indices = @transform_11, window_bounds = array<i64: 192, 128>}, {pipeline_mode = #tpu.pipeline_mode<synchronous>, transform_indices = @transform_12, window_bounds = array<i64: 1, 128>}, {transform_indices = @transform_13, window_bounds = array<i64: 1, 16, 128>}]} {
    %c0 = arith.constant 0 : index
    %c0_0 = arith.constant 0 : index
    %c0_1 = arith.constant 0 : index
    %c0_2 = arith.constant 0 : index
    %0 = vector.load %arg1[%c0, %c0_0, %c0_1, %c0_2] : memref<1x5x5x128xbf16, #tpu.memory_space<vmem>>, vector<1x5x5x128xbf16>
    %1 = vector.shape_cast %0 : vector<1x5x5x128xbf16> to vector<5x5x128xbf16>
    %c0_3 = arith.constant 0 : index
    %c0_4 = arith.constant 0 : index
    %c0_5 = arith.constant 0 : index
    %c0_6 = arith.constant 0 : index
    %2 = vector.load %arg2[%c0_3, %c0_4, %c0_5, %c0_6] : memref<1x5x5x128xbf16, #tpu.memory_space<vmem>>, vector<1x5x5x128xbf16>
    %3 = vector.shape_cast %2 : vector<1x5x5x128xbf16> to vector<5x5x128xbf16>
    %c0_7 = arith.constant 0 : index
    %c0_8 = arith.constant 0 : index
    %c0_9 = arith.constant 0 : index
    %c0_10 = arith.constant 0 : index
    %4 = vector.load %arg3[%c0_7, %c0_8, %c0_9, %c0_10] : memref<1x5x5x128xbf16, #tpu.memory_space<vmem>>, vector<1x5x5x128xbf16>
    %5 = vector.shape_cast %4 : vector<1x5x5x128xbf16> to vector<5x5x128xbf16>
    %c0_11 = arith.constant 0 : index
    %c0_12 = arith.constant 0 : index
    %c0_13 = arith.constant 0 : index
    %c0_14 = arith.constant 0 : index
    %6 = vector.load %arg4[%c0_11, %c0_12, %c0_13, %c0_14] : memref<1x5x5x128xbf16, #tpu.memory_space<vmem>>, vector<1x5x5x128xbf16>
    %7 = vector.shape_cast %6 : vector<1x5x5x128xbf16> to vector<5x5x128xbf16>
    %8 = vector.extract_strided_slice %1 {offsets = [0, 0, 0], sizes = [4, 4, 128], strides = [1, 1, 1]} : vector<5x5x128xbf16> to vector<4x4x128xbf16>
    %9 = vector.shape_cast %8 : vector<4x4x128xbf16> to vector<16x128xbf16>
    %10 = vector.extract_strided_slice %3 {offsets = [0, 0, 0], sizes = [4, 4, 128], strides = [1, 1, 1]} : vector<5x5x128xbf16> to vector<4x4x128xbf16>
    %11 = vector.shape_cast %10 : vector<4x4x128xbf16> to vector<16x128xbf16>
    %12 = vector.extract_strided_slice %1 {offsets = [0, 1, 0], sizes = [4, 4, 128], strides = [1, 1, 1]} : vector<5x5x128xbf16> to vector<4x4x128xbf16>
    %13 = vector.shape_cast %12 : vector<4x4x128xbf16> to vector<16x128xbf16>
    %14 = vector.extract_strided_slice %5 {offsets = [0, 0, 0], sizes = [4, 4, 128], strides = [1, 1, 1]} : vector<5x5x128xbf16> to vector<4x4x128xbf16>
    %15 = vector.shape_cast %14 : vector<4x4x128xbf16> to vector<16x128xbf16>
    %16 = vector.extract_strided_slice %7 {offsets = [0, 0, 0], sizes = [4, 4, 128], strides = [1, 1, 1]} : vector<5x5x128xbf16> to vector<4x4x128xbf16>
    %17 = vector.shape_cast %16 : vector<4x4x128xbf16> to vector<16x128xbf16>
    %18 = vector.extract_strided_slice %5 {offsets = [0, 1, 0], sizes = [4, 4, 128], strides = [1, 1, 1]} : vector<5x5x128xbf16> to vector<4x4x128xbf16>
    %19 = vector.shape_cast %18 : vector<4x4x128xbf16> to vector<16x128xbf16>
    %20 = vector.extract_strided_slice %1 {offsets = [1, 0, 0], sizes = [4, 4, 128], strides = [1, 1, 1]} : vector<5x5x128xbf16> to vector<4x4x128xbf16>
    %21 = vector.shape_cast %20 : vector<4x4x128xbf16> to vector<16x128xbf16>
    %22 = vector.extract_strided_slice %3 {offsets = [1, 0, 0], sizes = [4, 4, 128], strides = [1, 1, 1]} : vector<5x5x128xbf16> to vector<4x4x128xbf16>
    %23 = vector.shape_cast %22 : vector<4x4x128xbf16> to vector<16x128xbf16>
    %24 = vector.extract_strided_slice %1 {offsets = [1, 1, 0], sizes = [4, 4, 128], strides = [1, 1, 1]} : vector<5x5x128xbf16> to vector<4x4x128xbf16>
    %25 = vector.shape_cast %24 : vector<4x4x128xbf16> to vector<16x128xbf16>
    %26 = tpu.concatenate %9, %11, %13, %15, %17, %19, %21, %23, %25 in 1 : vector<16x128xbf16>, vector<16x128xbf16>, vector<16x128xbf16>, vector<16x128xbf16>, vector<16x128xbf16>, vector<16x128xbf16>, vector<16x128xbf16>, vector<16x128xbf16>, vector<16x128xbf16> -> vector<16x1152xbf16>
    %c0_15 = arith.constant 0 : index
    %c0_16 = arith.constant 0 : index
    %27 = vector.load %arg5[%c0_15, %c0_16] : memref<1152x128xbf16, #tpu.memory_space<vmem>>, vector<1152x128xbf16>
    %cst = arith.constant dense<0.000000e+00> : vector<16x128xf32>
    %28 = tpu.matmul %26, %27, %cst {dimension_numbers = #tpu.dot_dimension_numbers<[1], [0], [0], [1], [0, 0, 1, 1], [], []>} : vector<16x1152xbf16>, vector<1152x128xbf16>, vector<16x128xf32> -> vector<16x128xf32>
    %c0_17 = arith.constant 0 : index
    %c0_18 = arith.constant 0 : index
    %29 = vector.load %arg6[%c0_17, %c0_18] : memref<1x128xf32, #tpu.memory_space<vmem>>, vector<1x128xf32>
    %30 = vector.broadcast %29 : vector<1x128xf32> to vector<16x128xf32>
    %31 = arith.addf %28, %30 : vector<16x128xf32>
    %cst_19 = arith.constant 0.000000e+00 : f32
    %32 = vector.broadcast %cst_19 : f32 to vector<16x128xf32>
    %33 = arith.maximumf %31, %32 : vector<16x128xf32>
    %cst_20 = arith.constant dense<0.000000e+00> : vector<128xf32>
    %34 = vector.multi_reduction <add>, %33, %cst_20 [0] : vector<16x128xf32> to vector<128xf32>
    %35 = vector.shape_cast %34 : vector<128xf32> to vector<1x128xf32>
    %cst_21 = arith.constant 1.600000e+01 : f32
    %36 = vector.broadcast %cst_21 : f32 to vector<1x128xf32>
    %37 = arith.divf %35, %36 : vector<1x128xf32>
    %c0_22 = arith.constant 0 : index
    %c0_23 = arith.constant 0 : index
    %38 = vector.load %arg7[%c0_22, %c0_23] : memref<128x16xf32, #tpu.memory_space<vmem>>, vector<128x16xf32>
    %cst_24 = arith.constant dense<0.000000e+00> : vector<1x16xf32>
    %39 = tpu.matmul %37, %38, %cst_24 {dimension_numbers = #tpu.dot_dimension_numbers<[1], [0], [0], [1], [0, 0, 1, 1], [], []>} : vector<1x128xf32>, vector<128x16xf32>, vector<1x16xf32> -> vector<1x16xf32>
    %c0_25 = arith.constant 0 : index
    %c0_26 = arith.constant 0 : index
    %40 = vector.load %arg8[%c0_25, %c0_26] : memref<1x16xf32, #tpu.memory_space<vmem>>, vector<1x16xf32>
    %41 = arith.addf %39, %40 : vector<1x16xf32>
    %cst_27 = arith.constant 0.000000e+00 : f32
    %42 = vector.broadcast %cst_27 : f32 to vector<1x16xf32>
    %43 = arith.maximumf %41, %42 : vector<1x16xf32>
    %c0_28 = arith.constant 0 : index
    %c0_29 = arith.constant 0 : index
    %44 = vector.load %arg9[%c0_28, %c0_29] : memref<16x128xf32, #tpu.memory_space<vmem>>, vector<16x128xf32>
    %cst_30 = arith.constant dense<0.000000e+00> : vector<1x128xf32>
    %45 = tpu.matmul %43, %44, %cst_30 {dimension_numbers = #tpu.dot_dimension_numbers<[1], [0], [0], [1], [0, 0, 1, 1], [], []>} : vector<1x16xf32>, vector<16x128xf32>, vector<1x128xf32> -> vector<1x128xf32>
    %c0_31 = arith.constant 0 : index
    %c0_32 = arith.constant 0 : index
    %46 = vector.load %arg10[%c0_31, %c0_32] : memref<1x128xf32, #tpu.memory_space<vmem>>, vector<1x128xf32>
    %47 = arith.addf %45, %46 : vector<1x128xf32>
    %48 = arith.negf %47 : vector<1x128xf32>
    %49 = math.exp %48 : vector<1x128xf32>
    %cst_33 = arith.constant 1.000000e+00 : f32
    %50 = vector.broadcast %cst_33 : f32 to vector<1x128xf32>
    %51 = arith.addf %50, %49 : vector<1x128xf32>
    %52 = arith.divf %50, %51 : vector<1x128xf32>
    %53 = vector.broadcast %52 : vector<1x128xf32> to vector<16x128xf32>
    %54 = arith.mulf %33, %53 : vector<16x128xf32>
    %55 = arith.truncf %54 : vector<16x128xf32> to vector<16x128xbf16>
    %c0_34 = arith.constant 0 : index
    %c0_35 = arith.constant 0 : index
    %c0_36 = arith.constant 0 : index
    %56 = vector.load %arg11[%c0_34, %c0_35, %c0_36] : memref<1x16x64xbf16, #tpu.memory_space<vmem>>, vector<1x16x64xbf16>
    %57 = vector.shape_cast %56 : vector<1x16x64xbf16> to vector<16x64xbf16>
    %58 = tpu.concatenate %55, %57 in 1 : vector<16x128xbf16>, vector<16x64xbf16> -> vector<16x192xbf16>
    %c0_37 = arith.constant 0 : index
    %c0_38 = arith.constant 0 : index
    %59 = vector.load %arg12[%c0_37, %c0_38] : memref<192x128xbf16, #tpu.memory_space<vmem>>, vector<192x128xbf16>
    %cst_39 = arith.constant dense<0.000000e+00> : vector<16x128xf32>
    %60 = tpu.matmul %58, %59, %cst_39 {dimension_numbers = #tpu.dot_dimension_numbers<[1], [0], [0], [1], [0, 0, 1, 1], [], []>} : vector<16x192xbf16>, vector<192x128xbf16>, vector<16x128xf32> -> vector<16x128xf32>
    %c0_40 = arith.constant 0 : index
    %c0_41 = arith.constant 0 : index
    %61 = vector.load %arg13[%c0_40, %c0_41] : memref<1x128xf32, #tpu.memory_space<vmem>>, vector<1x128xf32>
    %62 = vector.broadcast %61 : vector<1x128xf32> to vector<16x128xf32>
    %63 = arith.addf %60, %62 : vector<16x128xf32>
    %cst_42 = arith.constant 0.000000e+00 : f32
    %64 = vector.broadcast %cst_42 : f32 to vector<16x128xf32>
    %65 = arith.maximumf %63, %64 : vector<16x128xf32>
    %66 = arith.truncf %65 : vector<16x128xf32> to vector<16x128xbf16>
    %c0_43 = arith.constant 0 : index
    %c0_44 = arith.constant 0 : index
    %c0_45 = arith.constant 0 : index
    %67 = vector.load %arg14[%c0_43, %c0_44, %c0_45] : memref<1x16x128xbf16, #tpu.memory_space<vmem>>, vector<1x16x128xbf16>
    %68 = vector.shape_cast %67 : vector<1x16x128xbf16> to vector<16x128xbf16>
    %69 = vector.shape_cast %66 : vector<16x128xbf16> to vector<1x16x128xbf16>
    tpu.vector_store %arg14[%c0_43, %c0_44, %c0_45], %69 {strides = array<i32>} : memref<1x16x128xbf16, #tpu.memory_space<vmem>>, vector<1x16x128xbf16>,
    return
  }
  func.func @transform_0(%arg0: i32) -> (i32, i32, i32, i32) {
    %c0_i32 = arith.constant 0 : i32
    %c0_i32_0 = arith.constant 0 : i32
    %c0_i32_1 = arith.constant 0 : i32
    %c0_i32_2 = arith.constant 0 : i32
    return %arg0, %c0_i32, %c0_i32_0, %c0_i32_1 : i32, i32, i32, i32
  }
  func.func @transform_1(%arg0: i32) -> (i32, i32, i32, i32) {
    %c0_i32 = arith.constant 0 : i32
    %c0_i32_0 = arith.constant 0 : i32
    %c0_i32_1 = arith.constant 0 : i32
    %c0_i32_2 = arith.constant 0 : i32
    return %arg0, %c0_i32, %c0_i32_0, %c0_i32_1 : i32, i32, i32, i32
  }
  func.func @transform_2(%arg0: i32) -> (i32, i32, i32, i32) {
    %c0_i32 = arith.constant 0 : i32
    %c0_i32_0 = arith.constant 0 : i32
    %c0_i32_1 = arith.constant 0 : i32
    %c0_i32_2 = arith.constant 0 : i32
    return %arg0, %c0_i32, %c0_i32_0, %c0_i32_1 : i32, i32, i32, i32
  }
  func.func @transform_3(%arg0: i32) -> (i32, i32, i32, i32) {
    %c0_i32 = arith.constant 0 : i32
    %c0_i32_0 = arith.constant 0 : i32
    %c0_i32_1 = arith.constant 0 : i32
    %c0_i32_2 = arith.constant 0 : i32
    return %arg0, %c0_i32, %c0_i32_0, %c0_i32_1 : i32, i32, i32, i32
  }
  func.func @transform_4(%arg0: i32) -> (i32, i32) {
    %c0_i32 = arith.constant 0 : i32
    %c0_i32_0 = arith.constant 0 : i32
    %c0_i32_1 = arith.constant 0 : i32
    return %c0_i32, %c0_i32_0 : i32, i32
  }
  func.func @transform_5(%arg0: i32) -> (i32, i32) {
    %c0_i32 = arith.constant 0 : i32
    %c0_i32_0 = arith.constant 0 : i32
    %c0_i32_1 = arith.constant 0 : i32
    return %c0_i32, %c0_i32_0 : i32, i32
  }
  func.func @transform_6(%arg0: i32) -> (i32, i32) {
    %c0_i32 = arith.constant 0 : i32
    %c0_i32_0 = arith.constant 0 : i32
    %c0_i32_1 = arith.constant 0 : i32
    return %c0_i32, %c0_i32_0 : i32, i32
  }
  func.func @transform_7(%arg0: i32) -> (i32, i32) {
    %c0_i32 = arith.constant 0 : i32
    %c0_i32_0 = arith.constant 0 : i32
    %c0_i32_1 = arith.constant 0 : i32
    return %c0_i32, %c0_i32_0 : i32, i32
  }
  func.func @transform_8(%arg0: i32) -> (i32, i32) {
    %c0_i32 = arith.constant 0 : i32
    %c0_i32_0 = arith.constant 0 : i32
    %c0_i32_1 = arith.constant 0 : i32
    return %c0_i32, %c0_i32_0 : i32, i32
  }
  func.func @transform_9(%arg0: i32) -> (i32, i32) {
    %c0_i32 = arith.constant 0 : i32
    %c0_i32_0 = arith.constant 0 : i32
    %c0_i32_1 = arith.constant 0 : i32
    return %c0_i32, %c0_i32_0 : i32, i32
  }
  func.func @transform_10(%arg0: i32) -> (i32, i32, i32) {
    %c0_i32 = arith.constant 0 : i32
    %c0_i32_0 = arith.constant 0 : i32
    %c0_i32_1 = arith.constant 0 : i32
    return %arg0, %c0_i32, %c0_i32_0 : i32, i32, i32
  }
  func.func @transform_11(%arg0: i32) -> (i32, i32) {
    %c0_i32 = arith.constant 0 : i32
    %c0_i32_0 = arith.constant 0 : i32
    %c0_i32_1 = arith.constant 0 : i32
    return %c0_i32, %c0_i32_0 : i32, i32
  }
  func.func @transform_12(%arg0: i32) -> (i32, i32) {
    %c0_i32 = arith.constant 0 : i32
    %c0_i32_0 = arith.constant 0 : i32
    %c0_i32_1 = arith.constant 0 : i32
    return %c0_i32, %c0_i32_0 : i32, i32
  }
  func.func @transform_13(%arg0: i32) -> (i32, i32, i32) {
    %c0_i32 = arith.constant 0 : i32
    %c0_i32_0 = arith.constant 0 : i32
    %c0_i32_1 = arith.constant 0 : i32
    return %arg0, %c0_i32, %c0_i32_0 : i32, i32, i32
  }
}

</mosaic_0001>

<llo_original>
// kernel: block_forward_pallas.2
$region0: #{block_forward_pallas.2}
  #allocation0 [shape = 'u32[]', space=smem, size = 0x4, offset = 0x4, fixed_abs, tag = 'smem constant byte address 0x4 - core index']
  #allocation1 [shape = 'u32[144,128]{1,0:T(1,128)}', space=vmem, size = 0x12000, scoped, tag = 'internal scratch']
  %s0 = inlined_call_operand.vmem [shape: bf16[128,64], index: 0, kind: input, shape index: {}]
  %s1 = inlined_call_operand.vmem [shape: bf16[64,128], index: 1, kind: input, shape index: {}]
  %s2 = inlined_call_operand.vmem [shape: f32[1,128], index: 2, kind: input, shape index: {}]
  %s3 = inlined_call_operand.vmem [shape: bf16[128,128], index: 3, kind: output, shape index: {}]
  %s4 = sld [smem:[#allocation0]]
  $region45: #{block_forward_pallas.2} parent=0
    _
  %s6 = ssub.s32 1, %s4
  %s7 = scalar_select 0, %s6, %s4
  loop: start=0, step=1, limit=4
  $region2: #{block_forward_pallas.2} parent=0 // loop_pre_header
    _
  $region3: #{block_forward_pallas.2} parent=0 // loop_header
    %s9 = sphi 0, %s13
    %p10 = scmp.ge.s32.totalorder %s9, 4
    %s19 = sphi 0, %s21
    %s22 = sphi 0, %s19
    %s23 = sphi 0, %s22
    %s39 = sphi 0, %s23
    %s43 = sphi 0, %s43
    %s45 = sphi 0, %s43
    %s46 = sphi 0, %s45
    %s60 = sphi 0, %s46
    %s64 = sphi 0, %s64
    %s66 = sphi 0, %s64
    %s67 = sphi 0, %s66
    %s81 = sphi 0, %s67
    %s87 = sphi 0, %s89
    %s90 = sphi 0, %s87
    %s91 = sphi 0, %s90
    %s107 = sphi 0, %s91
  $region4: #{block_forward_pallas.2} parent=0 // loop_header_branch
    %12 = sbr.rel (%p10) target = $region8
  $region5: #{block_forward_pallas.2} parent=0 // loop_body
    %s14 = ssub.s32 %s9, 1
    %s15 = ssub.s32 %s9, 2
    %s16 = sadd.s32 %s9, 1
    %s17 = ssub.s32 %s9, %s16
    %p18 = scmp.eq.s32.totalorder %s17, 0
    %s20 = sadd.s32 %s19, 1
    %s21 = scalar_select %p18, %s19, %s20
    %p24 = pneg %p18
    %p25 = scmp.eq.s32.totalorder %s9, 1
    %p26 = por %p24, %p25
    %p27 = scmp.ne.s32.totalorder %s19, %s22
    %p28 = scmp.eq.s32.totalorder %s9, 0
    %p29 = por %p27, %p28
    %p30 = scmp.ne.s32.totalorder %s19, %s22
    %p31 = scmp.eq.s32.totalorder %s14, 1
    %p32 = por %p30, %p31
    %p33 = scmp.ne.s32.totalorder %s22, %s23
    %p34 = scmp.eq.s32.totalorder %s14, 0
    %p35 = por %p33, %p34
    %p36 = scmp.ne.s32.totalorder %s22, %s23
    %p37 = scmp.eq.s32.totalorder %s15, 1
    %p38 = por %p36, %p37
    %p40 = scmp.ne.s32.totalorder %s23, %s39
    %p41 = scmp.eq.s32.totalorder %s15, 0
    %p42 = por %p40, %p41
    %s44 = sadd.s32 %s43, 1
    %p47 = scmp.eq.s32.totalorder %s9, 1
    %p48 = scmp.ne.s32.totalorder %s43, %s45
    %p49 = scmp.eq.s32.totalorder %s9, 0
    %p50 = por %p48, %p49
    %p51 = scmp.ne.s32.totalorder %s43, %s45
    %p52 = scmp.eq.s32.totalorder %s14, 1
    %p53 = por %p51, %p52
    %p54 = scmp.ne.s32.totalorder %s45, %s46
    %p55 = scmp.eq.s32.totalorder %s14, 0
    %p56 = por %p54, %p55
    %p57 = scmp.ne.s32.totalorder %s45, %s46
    %p58 = scmp.eq.s32.totalorder %s15, 1
    %p59 = por %p57, %p58
    %p61 = scmp.ne.s32.totalorder %s46, %s60
    %p62 = scmp.eq.s32.totalorder %s15, 0
    %p63 = por %p61, %p62
    %s65 = sadd.s32 %s64, 1
    %p68 = scmp.eq.s32.totalorder %s9, 1
    %p69 = scmp.ne.s32.totalorder %s64, %s66
    %p70 = scmp.eq.s32.totalorder %s9, 0
    %p71 = por %p69, %p70
    %p72 = scmp.ne.s32.totalorder %s64, %s66
    %p73 = scmp.eq.s32.totalorder %s14, 1
    %p74 = por %p72, %p73
    %p75 = scmp.ne.s32.totalorder %s66, %s67
    %p76 = scmp.eq.s32.totalorder %s14, 0
    %p77 = por %p75, %p76
    %p78 = scmp.ne.s32.totalorder %s66, %s67
    %p79 = scmp.eq.s32.totalorder %s15, 1
    %p80 = por %p78, %p79
    %p82 = scmp.ne.s32.totalorder %s67, %s81
    %p83 = scmp.eq.s32.totalorder %s15, 0
    %p84 = por %p82, %p83
    %s85 = ssub.s32 %s9, %s16
    %p86 = scmp.eq.s32.totalorder %s85, 0
    %s88 = sadd.s32 %s87, 1
    %s89 = scalar_select %p86, %s87, %s88
    %p92 = pneg %p86
    %p93 = scmp.eq.s32.totalorder %s9, 1
    %p94 = por %p92, %p93
    %p95 = scmp.ne.s32.totalorder %s87, %s90
    %p96 = scmp.eq.s32.totalorder %s9, 0
    %p97 = por %p95, %p96
    %p98 = scmp.ne.s32.totalorder %s87, %s90
    %p99 = scmp.eq.s32.totalorder %s14, 1
    %p100 = por %p98, %p99
    %p101 = scmp.ne.s32.totalorder %s90, %s91
    %p102 = scmp.eq.s32.totalorder %s14, 0
    %p103 = por %p101, %p102
    %p104 = scmp.ne.s32.totalorder %s90, %s91
    %p105 = scmp.eq.s32.totalorder %s15, 1
    %p106 = por %p104, %p105
    %p108 = scmp.ne.s32.totalorder %s91, %s107
    %p109 = scmp.eq.s32.totalorder %s15, 0
    %p110 = por %p108, %p109
    %p111 = scmp.le.s32.totalorder 1, %s9
    %p112 = scmp.lt.s32.totalorder %s9, 3
    %p113 = pnand %p111, %p112
    %p114 = pneg %p113
    // Predicated region
    $region9: #{block_forward_pallas.2} parent=5 // pred_check
      _
    $region10: #{block_forward_pallas.2} parent=5 // pred_check_branch
      %116 = sbr.rel (%p113) target = $region12
    $region11: #{block_forward_pallas.2} parent=5 // pred_region
      %s117 = ssub.s32 %s9, 1
      // Predicated region
      $region13: #{block_forward_pallas.2} parent=11 // pred_check
        %p118 = pneg %p56
      $region14: #{block_forward_pallas.2} parent=11 // pred_check_branch
        %120 = sbr.rel (%p118) target = $region16
      $region15: #{block_forward_pallas.2} parent=11 // pred_region
        _
      $region16: #{block_forward_pallas.2} parent=11 // pred_fallthru
        _
      // Predicated region
      $region17: #{block_forward_pallas.2} parent=11 // pred_check
        %p121 = pneg %p77
      $region18: #{block_forward_pallas.2} parent=11 // pred_check_branch
        %123 = sbr.rel (%p121) target = $region20
      $region19: #{block_forward_pallas.2} parent=11 // pred_region
        _
      $region20: #{block_forward_pallas.2} parent=11 // pred_fallthru
        _
    $region12: #{block_forward_pallas.2} parent=5 // pred_fallthru
      _
    %p124 = scmp.lt.s32.totalorder %s9, 2
    // Predicated region
    $region21: #{block_forward_pallas.2} parent=5 // pred_check
      %p125 = pneg %p124
    $region22: #{block_forward_pallas.2} parent=5 // pred_check_branch
      %127 = sbr.rel (%p125) target = $region24
    $region23: #{block_forward_pallas.2} parent=5 // pred_region
      // Predicated region
      $region25: #{block_forward_pallas.2} parent=23 // pred_check
        %p128 = pneg %p29
      $region26: #{block_forward_pallas.2} parent=23 // pred_check_branch
        %130 = sbr.rel (%p128) target = $region28
      $region27: #{block_forward_pallas.2} parent=23 // pred_region
        %s131 = smul.u32 8, %s9
        %p132 = scmp.lt.s32.totalorder %s131, 15
        %s133 = scalar_select %p132, %s131, 15
        %s134 = smul.addr %s133, 4
        %s135 = scalar_lea.vmem %s0, %s134
        %s136 = smul.u32 8, %s9
      $region28: #{block_forward_pallas.2} parent=23 // pred_fallthru
        _
    $region24: #{block_forward_pallas.2} parent=5 // pred_fallthru
      _
    %p137 = scmp.le.s32.totalorder 1, %s9
    %p138 = scmp.lt.s32.totalorder %s9, 3
    %p139 = pnand %p137, %p138
    %p140 = pneg %p139
    // Predicated region
    $region29: #{block_forward_pallas.2} parent=5 // pred_check
      _
    $region30: #{block_forward_pallas.2} parent=5 // pred_check_branch
      %142 = sbr.rel (%p139) target = $region32
    $region31: #{block_forward_pallas.2} parent=5 // pred_region
      %s143 = ssub.s32 %s9, 1
      %s144 = smul.u32 8, %s14
      %p145 = scmp.lt.s32.totalorder %s144, 15
      %s146 = scalar_select %p145, %s144, 15
      %s147 = smul.addr %s146, 4
      %s148 = scalar_lea.vmem %s0, %s147
      %p149 = pneg %p35
      %p150 = pneg %p32
      %p151 = pneg %p56
      %p152 = pneg %p53
      %p153 = pneg %p77
      %p154 = pneg %p74
      %p155 = pneg %p103
      %p156 = pneg %p100
      %s157 = smul.u32 8, %s14
      %p158 = scmp.lt.s32.totalorder %s157, 15
      %s159 = scalar_select %p158, %s157, 15
      %s160 = smul.addr %s159, 4
      %s161 = scalar_lea.vmem %s3, %s160
      %s162 = smul.u32 8, %s14
      %p163 = scmp.lt.s32.totalorder %s162, 15
      %s164 = scalar_select %p163, %s162, 15
      %s165 = smul.addr %s164, 4
      %s166 = scalar_lea.vmem %s0, %s165
      %s167 = smul.u32 8, %s14
      %s168 = smul.u32 8, %s14
      %p169 = scmp.lt.s32.totalorder %s168, 15
      %s170 = scalar_select %p169, %s168, 15
      %s171 = smul.addr %s170, 4
      %s172 = scalar_lea.vmem %s3, %s171
      %s173 = smul.u32 8, %s14
      %v175 = vld [vmem:[%s166] sm:$0xf]
      %v176 = vld [vmem:[%s166 + $0x4] sm:$0xf]
      %v177 = vld [vmem:[%s166 + $0x8] sm:$0xf]
      %v178 = vld [vmem:[%s166 + $0xc] sm:$0xf]
      %v179 = vld [vmem:[%s166 + $0x10] sm:$0xf]
      %v180 = vld [vmem:[%s166 + $0x14] sm:$0xf]
      %v181 = vld [vmem:[%s166 + $0x18] sm:$0xf]
      %v182 = vld [vmem:[%s166 + $0x1c] sm:$0xf]
      %v183 = vld [vmem:[%s1] sm:$0xf]
      %v184 = vld [vmem:[%s1 + $0x4] sm:$0xf]
      %v185 = vld [vmem:[%s1 + $0x8] sm:$0xf]
      %v186 = vld [vmem:[%s1 + $0xc] sm:$0xf]
      %v187 = vld [vmem:[%s1 + $0x10] sm:$0xf]
      %v188 = vld [vmem:[%s1 + $0x14] sm:$0xf]
      %v189 = vld [vmem:[%s1 + $0x18] sm:$0xf]
      %v190 = vld [vmem:[%s1 + $0x1c] sm:$0xf]
      %v191 = vld [vmem:[%s2] sm:$0x1]
      %v193 = vlaneseq
      %v194 = vshrl.u32 %v193, 7
      %v195 = vsub.s32 0, %v194
      %v196 = vrot.slane %v191, %v195
      %v206 = vunpack.c.l.b16 %v175
      %v207 = vunpack.c.l.b16 %v176
      %v208 = vunpack.c.l.b16 %v177
      %v209 = vunpack.c.l.b16 %v178
      %v210 = vunpack.c.l.b16 %v179
      %v211 = vunpack.c.l.b16 %v180
      %v212 = vunpack.c.l.b16 %v181
      %v213 = vunpack.c.l.b16 %v182
      %v214 = vpack.c.b16 %v207, %v206
      %v215 = vpack.c.b16 %v209, %v208
      %v216 = vpack.c.b16 %v211, %v210
      %v217 = vpack.c.b16 %v213, %v212
      %v226 = vunpack.c.l.b16 %v183
      %v227 = vunpack.c.l.b16 %v184
      %v228 = vunpack.c.l.b16 %v185
      %v229 = vunpack.c.l.b16 %v186
      %v230 = vunpack.c.l.b16 %v187
      %v231 = vunpack.c.l.b16 %v188
      %v232 = vunpack.c.l.b16 %v189
      %v233 = vunpack.c.l.b16 %v190
      %v234 = vpack.c.b16 %v227, %v226
      %v235 = vpack.c.b16 %v229, %v228
      %v236 = vpack.c.b16 %v231, %v230
      %v237 = vpack.c.b16 %v233, %v232
      %vm242 = vcmask 523264
      %v244 = vsel %vm242, %v214, 0
      %v247 = vsel %vm242, %v215, 0
      %v250 = vsel %vm242, %v216, 0
      %v253 = vsel %vm242, %v217, 0
      %255 = vmatprep.subr.bf16.mxu0 0
      %256 = vmatpush1.bf16.msra.mxu0 0
      %257 = vmatprep.subr.bf16.mxu0 0
      %258 = vmatpush1.bf16.msra.mxu0 0
      %259 = vmatprep.subr.bf16.mxu0 0
      %260 = vmatpush1.bf16.msra.mxu0 0
      %261 = vmatprep.subr.bf16.mxu0 0
      %262 = vmatpush1.bf16.msra.mxu0 0
      %263 = vmatprep.subr.bf16.mxu0 0
      %264 = vmatpush1.bf16.msra.mxu0 %v237
      %265 = vmatprep.subr.bf16.mxu0 0
      %266 = vmatpush1.bf16.msra.mxu0 %v236
      %267 = vmatprep.subr.bf16.mxu0 0
      %268 = vmatpush1.bf16.msra.mxu0 %v235
      %269 = vmatprep.subr.bf16.mxu0 0
      %270 = vmatpush1.bf16.msra.mxu0 %v234
      %271 = vmatprep.subr.bf16.mxu0 0
      %272 = vmatpush2.bf16.msra.mxu0 0
      %273 = vmatprep.subr.bf16.mxu0 0
      %274 = vmatpush2.bf16.msra.mxu0 0
      %275 = vmatprep.subr.bf16.mxu0 0
      %276 = vmatpush2.bf16.msra.mxu0 0
      %277 = vmatprep.subr.bf16.mxu0 0
      %278 = vmatpush2.bf16.msra.mxu0 0
      %279 = vmatprep.subr.bf16.mxu0 0
      %280 = vmatpush2.bf16.msra.mxu0 0
      %281 = vmatprep.subr.bf16.mxu0 0
      %282 = vmatpush2.bf16.msra.mxu0 0
      %283 = vmatprep.subr.bf16.mxu0 0
      %284 = vmatpush2.bf16.msra.mxu0 0
      %285 = vmatprep.subr.bf16.mxu0 0
      %286 = vmatpush2.bf16.msra.mxu0 0
      %287 = vmatprep.mubr.bf16.mxu0 0
      %288 = vmatmul.mubr.bf16.gmra.mxu0 %v244
      %v289 = vpop.f32.mrf.mxu0
      %v290 = vadd.f32 %v196, %v289
      %v291 = vpop.f32.mrf.mxu0
      %v292 = vpop.f32.mrf.mxu0
      %v293 = vadd.f32 %v196, %v292
      %v294 = vpop.f32.mrf.mxu0
      %295 = vmatprep.mubr.bf16.mxu0 0
      %296 = vmatmul.mubr.bf16.gmra.mxu0 %v247
      %v297 = vpop.f32.mrf.mxu0
      %v298 = vadd.f32 %v196, %v297
      %v299 = vpop.f32.mrf.mxu0
      %v300 = vpop.f32.mrf.mxu0
      %v301 = vadd.f32 %v196, %v300
      %v302 = vpop.f32.mrf.mxu0
      %303 = vmatprep.mubr.bf16.mxu0 0
      %304 = vmatmul.mubr.bf16.gmra.mxu0 %v250
      %v305 = vpop.f32.mrf.mxu0
      %v306 = vadd.f32 %v196, %v305
      %v307 = vpop.f32.mrf.mxu0
      %v308 = vpop.f32.mrf.mxu0
      %v309 = vadd.f32 %v196, %v308
      %v310 = vpop.f32.mrf.mxu0
      %311 = vmatprep.mubr.bf16.mxu0 0
      %312 = vmatmul.mubr.bf16.gmra.mxu0 %v253
      %v313 = vpop.f32.mrf.mxu0
      %v314 = vadd.f32 %v196, %v313
      %v315 = vpop.f32.mrf.mxu0
      %v316 = vpop.f32.mrf.mxu0
      %v317 = vadd.f32 %v196, %v316
      %v318 = vpop.f32.mrf.mxu0
      %319 = vdwg.mxu0
      %v320 = vmax.f32 %v290, 0.0
      %v321 = vmax.f32 %v293, 0.0
      %v322 = vmax.f32 %v298, 0.0
      %v323 = vmax.f32 %v301, 0.0
      %v324 = vmax.f32 %v306, 0.0
      %v325 = vmax.f32 %v309, 0.0
      %v326 = vmax.f32 %v314, 0.0
      %v327 = vmax.f32 %v317, 0.0
      %v328 = vpack.c.bf16 %v321, %v320
      %v329 = vpack.c.bf16 %v323, %v322
      %v330 = vpack.c.bf16 %v325, %v324
      %v331 = vpack.c.bf16 %v327, %v326
      %v336 = vunpack.c.l.b16 %v328
      %v337 = vunpack.c.h.b16 %v328
      %v338 = vunpack.c.l.b16 %v329
      %v339 = vunpack.c.h.b16 %v329
      %v340 = vunpack.c.l.b16 %v330
      %v341 = vunpack.c.h.b16 %v330
      %v342 = vunpack.c.l.b16 %v331
      %v343 = vunpack.c.h.b16 %v331
      %v344 = vpack.c.b16 %v336, %v336
      %v345 = vpack.c.b16 %v337, %v337
      %v346 = vpack.c.b16 %v338, %v338
      %v347 = vpack.c.b16 %v339, %v339
      %v348 = vpack.c.b16 %v340, %v340
      %v349 = vpack.c.b16 %v341, %v341
      %v350 = vpack.c.b16 %v342, %v342
      %v351 = vpack.c.b16 %v343, %v343
      %360 = vst [vmem:[%s172] sm:$0xf] %v344
      %361 = vst [vmem:[%s172 + $0x4] sm:$0xf] %v345
      %362 = vst [vmem:[%s172 + $0x8] sm:$0xf] %v346
      %363 = vst [vmem:[%s172 + $0xc] sm:$0xf] %v347
      %364 = vst [vmem:[%s172 + $0x10] sm:$0xf] %v348
      %365 = vst [vmem:[%s172 + $0x14] sm:$0xf] %v349
      %366 = vst [vmem:[%s172 + $0x18] sm:$0xf] %v350
      %367 = vst [vmem:[%s172 + $0x1c] sm:$0xf] %v351
      %s368 = smul.u32 8, %s14
      %p369 = scmp.lt.s32.totalorder %s368, 15
      %s370 = scalar_select %p369, %s368, 15
      %s371 = smul.addr %s370, 4
      %s372 = scalar_lea.vmem %s3, %s371
      // Predicated region
      $region33: #{block_forward_pallas.2} parent=31 // pred_check
        %p373 = pneg %p100
      $region34: #{block_forward_pallas.2} parent=31 // pred_check_branch
        %375 = sbr.rel (%p373) target = $region36
      $region35: #{block_forward_pallas.2} parent=31 // pred_region
        %s376 = smul.u32 8, %s14
      $region36: #{block_forward_pallas.2} parent=31 // pred_fallthru
        _
    $region32: #{block_forward_pallas.2} parent=5 // pred_fallthru
      _
    %p377 = scmp.le.s32.totalorder 2, %s9
    // Predicated region
    $region37: #{block_forward_pallas.2} parent=5 // pred_check
      %p378 = pneg %p377
    $region38: #{block_forward_pallas.2} parent=5 // pred_check_branch
      %380 = sbr.rel (%p378) target = $region40
    $region39: #{block_forward_pallas.2} parent=5 // pred_region
      %s381 = ssub.s32 %s9, 2
      // Predicated region
      $region41: #{block_forward_pallas.2} parent=39 // pred_check
        %p382 = pneg %p106
      $region42: #{block_forward_pallas.2} parent=39 // pred_check_branch
        %384 = sbr.rel (%p382) target = $region44
      $region43: #{block_forward_pallas.2} parent=39 // pred_region
        %s385 = smul.u32 8, %s15
        %p386 = scmp.lt.s32.totalorder %s385, 15
        %s387 = scalar_select %p386, %s385, 15
        %s388 = smul.addr %s387, 4
        %s389 = scalar_lea.vmem %s3, %s388
      $region44: #{block_forward_pallas.2} parent=39 // pred_fallthru
        _
    $region40: #{block_forward_pallas.2} parent=5 // pred_fallthru
      _
  $region6: #{block_forward_pallas.2} parent=0 // loop_footer
    %s13 = sadd.s32 1, %s9
  $region7: #{block_forward_pallas.2} parent=0 // loop_footer_branch
    %8 = sbr.rel target = $region3
  $region8: #{block_forward_pallas.2} parent=0 // loop_exit
    _

// kernel: block_forward_pallas.3
$region0: #{block_forward_pallas.3}
  #allocation0 [shape = 'u32[]', space=smem, size = 0x4, offset = 0x4, fixed_abs, tag = 'smem constant byte address 0x4 - core index']
  #allocation1 [shape = 'u32[144,128]{1,0:T(1,128)}', space=vmem, size = 0x12000, scoped, tag = 'internal scratch']
  %s0 = inlined_call_operand.vmem [shape: bf16[2,5,5,128], index: 0, kind: input, shape index: {}]
  %s1 = inlined_call_operand.vmem [shape: bf16[2,5,5,128], index: 1, kind: input, shape index: {}]
  %s2 = inlined_call_operand.vmem [shape: bf16[2,5,5,128], index: 2, kind: input, shape index: {}]
  %s3 = inlined_call_operand.vmem [shape: bf16[2,5,5,128], index: 3, kind: input, shape index: {}]
  %s4 = inlined_call_operand.vmem [shape: bf16[1152,128], index: 4, kind: input, shape index: {}]
  %s5 = inlined_call_operand.vmem [shape: f32[1,128], index: 5, kind: input, shape index: {}]
  %s6 = inlined_call_operand.vmem [shape: f32[128,16], index: 6, kind: input, shape index: {}]
  %s7 = inlined_call_operand.vmem [shape: f32[1,16], index: 7, kind: input, shape index: {}]
  %s8 = inlined_call_operand.vmem [shape: f32[16,128], index: 8, kind: input, shape index: {}]
  %s9 = inlined_call_operand.vmem [shape: f32[1,128], index: 9, kind: input, shape index: {}]
  %s10 = inlined_call_operand.vmem [shape: bf16[2,16,64], index: 10, kind: input, shape index: {}]
  %s11 = inlined_call_operand.vmem [shape: bf16[192,128], index: 11, kind: input, shape index: {}]
  %s12 = inlined_call_operand.vmem [shape: f32[1,128], index: 12, kind: input, shape index: {}]
  %s13 = inlined_call_operand.vmem [shape: bf16[2,16,128], index: 13, kind: output, shape index: {}]
  %s14 = sld [smem:[#allocation0]]
  $region85: #{block_forward_pallas.3} parent=0
    _
  %s16 = ssub.s32 1, %s14
  %s17 = scalar_select 0, %s16, %s14
  loop: start=0, step=1, limit=4
  $region2: #{block_forward_pallas.3} parent=0 // loop_pre_header
    _
  $region3: #{block_forward_pallas.3} parent=0 // loop_header
    %s19 = sphi 0, %s23
    %p20 = scmp.ge.s32.totalorder %s19, 4
    %s29 = sphi 0, %s31
    %s32 = sphi 0, %s29
    %s33 = sphi 0, %s32
    %s49 = sphi 0, %s33
    %s55 = sphi 0, %s57
    %s58 = sphi 0, %s55
    %s59 = sphi 0, %s58
    %s75 = sphi 0, %s59
    %s81 = sphi 0, %s83
    %s84 = sphi 0, %s81
    %s85 = sphi 0, %s84
    %s101 = sphi 0, %s85
    %s107 = sphi 0, %s109
    %s110 = sphi 0, %s107
    %s111 = sphi 0, %s110
    %s127 = sphi 0, %s111
    %s131 = sphi 0, %s131
    %s133 = sphi 0, %s131
    %s134 = sphi 0, %s133
    %s148 = sphi 0, %s134
    %s152 = sphi 0, %s152
    %s154 = sphi 0, %s152
    %s155 = sphi 0, %s154
    %s169 = sphi 0, %s155
    %s173 = sphi 0, %s173
    %s175 = sphi 0, %s173
    %s176 = sphi 0, %s175
    %s190 = sphi 0, %s176
    %s194 = sphi 0, %s194
    %s196 = sphi 0, %s194
    %s197 = sphi 0, %s196
    %s211 = sphi 0, %s197
    %s215 = sphi 0, %s215
    %s217 = sphi 0, %s215
    %s218 = sphi 0, %s217
    %s232 = sphi 0, %s218
    %s236 = sphi 0, %s236
    %s238 = sphi 0, %s236
    %s239 = sphi 0, %s238
    %s253 = sphi 0, %s239
    %s259 = sphi 0, %s261
    %s262 = sphi 0, %s259
    %s263 = sphi 0, %s262
    %s279 = sphi 0, %s263
    %s283 = sphi 0, %s283
    %s285 = sphi 0, %s283
    %s286 = sphi 0, %s285
    %s300 = sphi 0, %s286
    %s304 = sphi 0, %s304
    %s306 = sphi 0, %s304
    %s307 = sphi 0, %s306
    %s321 = sphi 0, %s307
    %s327 = sphi 0, %s329
    %s330 = sphi 0, %s327
    %s331 = sphi 0, %s330
    %s347 = sphi 0, %s331
  $region4: #{block_forward_pallas.3} parent=0 // loop_header_branch
    %22 = sbr.rel (%p20) target = $region8
  $region5: #{block_forward_pallas.3} parent=0 // loop_body
    %s24 = ssub.s32 %s19, 1
    %s25 = ssub.s32 %s19, 2
    %s26 = sadd.s32 %s19, 1
    %s27 = ssub.s32 %s19, %s26
    %p28 = scmp.eq.s32.totalorder %s27, 0
    %s30 = sadd.s32 %s29, 1
    %s31 = scalar_select %p28, %s29, %s30
    %p34 = pneg %p28
    %p35 = scmp.eq.s32.totalorder %s19, 1
    %p36 = por %p34, %p35
    %p37 = scmp.ne.s32.totalorder %s29, %s32
    %p38 = scmp.eq.s32.totalorder %s19, 0
    %p39 = por %p37, %p38
    %p40 = scmp.ne.s32.totalorder %s29, %s32
    %p41 = scmp.eq.s32.totalorder %s24, 1
    %p42 = por %p40, %p41
    %p43 = scmp.ne.s32.totalorder %s32, %s33
    %p44 = scmp.eq.s32.totalorder %s24, 0
    %p45 = por %p43, %p44
    %p46 = scmp.ne.s32.totalorder %s32, %s33
    %p47 = scmp.eq.s32.totalorder %s25, 1
    %p48 = por %p46, %p47
    %p50 = scmp.ne.s32.totalorder %s33, %s49
    %p51 = scmp.eq.s32.totalorder %s25, 0
    %p52 = por %p50, %p51
    %s53 = ssub.s32 %s19, %s26
    %p54 = scmp.eq.s32.totalorder %s53, 0
    %s56 = sadd.s32 %s55, 1
    %s57 = scalar_select %p54, %s55, %s56
    %p60 = pneg %p54
    %p61 = scmp.eq.s32.totalorder %s19, 1
    %p62 = por %p60, %p61
    %p63 = scmp.ne.s32.totalorder %s55, %s58
    %p64 = scmp.eq.s32.totalorder %s19, 0
    %p65 = por %p63, %p64
    %p66 = scmp.ne.s32.totalorder %s55, %s58
    %p67 = scmp.eq.s32.totalorder %s24, 1
    %p68 = por %p66, %p67
    %p69 = scmp.ne.s32.totalorder %s58, %s59
    %p70 = scmp.eq.s32.totalorder %s24, 0
    %p71 = por %p69, %p70
    %p72 = scmp.ne.s32.totalorder %s58, %s59
    %p73 = scmp.eq.s32.totalorder %s25, 1
    %p74 = por %p72, %p73
    %p76 = scmp.ne.s32.totalorder %s59, %s75
    %p77 = scmp.eq.s32.totalorder %s25, 0
    %p78 = por %p76, %p77
    %s79 = ssub.s32 %s19, %s26
    %p80 = scmp.eq.s32.totalorder %s79, 0
    %s82 = sadd.s32 %s81, 1
    %s83 = scalar_select %p80, %s81, %s82
    %p86 = pneg %p80
    %p87 = scmp.eq.s32.totalorder %s19, 1
    %p88 = por %p86, %p87
    %p89 = scmp.ne.s32.totalorder %s81, %s84
    %p90 = scmp.eq.s32.totalorder %s19, 0
    %p91 = por %p89, %p90
    %p92 = scmp.ne.s32.totalorder %s81, %s84
    %p93 = scmp.eq.s32.totalorder %s24, 1
    %p94 = por %p92, %p93
    %p95 = scmp.ne.s32.totalorder %s84, %s85
    %p96 = scmp.eq.s32.totalorder %s24, 0
    %p97 = por %p95, %p96
    %p98 = scmp.ne.s32.totalorder %s84, %s85
    %p99 = scmp.eq.s32.totalorder %s25, 1
    %p100 = por %p98, %p99
    %p102 = scmp.ne.s32.totalorder %s85, %s101
    %p103 = scmp.eq.s32.totalorder %s25, 0
    %p104 = por %p102, %p103
    %s105 = ssub.s32 %s19, %s26
    %p106 = scmp.eq.s32.totalorder %s105, 0
    %s108 = sadd.s32 %s107, 1
    %s109 = scalar_select %p106, %s107, %s108
    %p112 = pneg %p106
    %p113 = scmp.eq.s32.totalorder %s19, 1
    %p114 = por %p112, %p113
    %p115 = scmp.ne.s32.totalorder %s107, %s110
    %p116 = scmp.eq.s32.totalorder %s19, 0
    %p117 = por %p115, %p116
    %p118 = scmp.ne.s32.totalorder %s107, %s110
    %p119 = scmp.eq.s32.totalorder %s24, 1
    %p120 = por %p118, %p119
    %p121 = scmp.ne.s32.totalorder %s110, %s111
    %p122 = scmp.eq.s32.totalorder %s24, 0
    %p123 = por %p121, %p122
    %p124 = scmp.ne.s32.totalorder %s110, %s111
    %p125 = scmp.eq.s32.totalorder %s25, 1
    %p126 = por %p124, %p125
    %p128 = scmp.ne.s32.totalorder %s111, %s127
    %p129 = scmp.eq.s32.totalorder %s25, 0
    %p130 = por %p128, %p129
    %s132 = sadd.s32 %s131, 1
    %p135 = scmp.eq.s32.totalorder %s19, 1
    %p136 = scmp.ne.s32.totalorder %s131, %s133
    %p137 = scmp.eq.s32.totalorder %s19, 0
    %p138 = por %p136, %p137
    %p139 = scmp.ne.s32.totalorder %s131, %s133
    %p140 = scmp.eq.s32.totalorder %s24, 1
    %p141 = por %p139, %p140
    %p142 = scmp.ne.s32.totalorder %s133, %s134
    %p143 = scmp.eq.s32.totalorder %s24, 0
    %p144 = por %p142, %p143
    %p145 = scmp.ne.s32.totalorder %s133, %s134
    %p146 = scmp.eq.s32.totalorder %s25, 1
    %p147 = por %p145, %p146
    %p149 = scmp.ne.s32.totalorder %s134, %s148
    %p150 = scmp.eq.s32.totalorder %s25, 0
    %p151 = por %p149, %p150
    %s153 = sadd.s32 %s152, 1
    %p156 = scmp.eq.s32.totalorder %s19, 1
    %p157 = scmp.ne.s32.totalorder %s152, %s154
    %p158 = scmp.eq.s32.totalorder %s19, 0
    %p159 = por %p157, %p158
    %p160 = scmp.ne.s32.totalorder %s152, %s154
    %p161 = scmp.eq.s32.totalorder %s24, 1
    %p162 = por %p160, %p161
    %p163 = scmp.ne.s32.totalorder %s154, %s155
    %p164 = scmp.eq.s32.totalorder %s24, 0
    %p165 = por %p163, %p164
    %p166 = scmp.ne.s32.totalorder %s154, %s155
    %p167 = scmp.eq.s32.totalorder %s25, 1
    %p168 = por %p166, %p167
    %p170 = scmp.ne.s32.totalorder %s155, %s169
    %p171 = scmp.eq.s32.totalorder %s25, 0
    %p172 = por %p170, %p171
    %s174 = sadd.s32 %s173, 1
    %p177 = scmp.eq.s32.totalorder %s19, 1
    %p178 = scmp.ne.s32.totalorder %s173, %s175
    %p179 = scmp.eq.s32.totalorder %s19, 0
    %p180 = por %p178, %p179
    %p181 = scmp.ne.s32.totalorder %s173, %s175
    %p182 = scmp.eq.s32.totalorder %s24, 1
    %p183 = por %p181, %p182
    %p184 = scmp.ne.s32.totalorder %s175, %s176
    %p185 = scmp.eq.s32.totalorder %s24, 0
    %p186 = por %p184, %p185
    %p187 = scmp.ne.s32.totalorder %s175, %s176
    %p188 = scmp.eq.s32.totalorder %s25, 1
    %p189 = por %p187, %p188
    %p191 = scmp.ne.s32.totalorder %s176, %s190
    %p192 = scmp.eq.s32.totalorder %s25, 0
    %p193 = por %p191, %p192
    %s195 = sadd.s32 %s194, 1
    %p198 = scmp.eq.s32.totalorder %s19, 1
    %p199 = scmp.ne.s32.totalorder %s194, %s196
    %p200 = scmp.eq.s32.totalorder %s19, 0
    %p201 = por %p199, %p200
    %p202 = scmp.ne.s32.totalorder %s194, %s196
    %p203 = scmp.eq.s32.totalorder %s24, 1
    %p204 = por %p202, %p203
    %p205 = scmp.ne.s32.totalorder %s196, %s197
    %p206 = scmp.eq.s32.totalorder %s24, 0
    %p207 = por %p205, %p206
    %p208 = scmp.ne.s32.totalorder %s196, %s197
    %p209 = scmp.eq.s32.totalorder %s25, 1
    %p210 = por %p208, %p209
    %p212 = scmp.ne.s32.totalorder %s197, %s211
    %p213 = scmp.eq.s32.totalorder %s25, 0
    %p214 = por %p212, %p213
    %s216 = sadd.s32 %s215, 1
    %p219 = scmp.eq.s32.totalorder %s19, 1
    %p220 = scmp.ne.s32.totalorder %s215, %s217
    %p221 = scmp.eq.s32.totalorder %s19, 0
    %p222 = por %p220, %p221
    %p223 = scmp.ne.s32.totalorder %s215, %s217
    %p224 = scmp.eq.s32.totalorder %s24, 1
    %p225 = por %p223, %p224
    %p226 = scmp.ne.s32.totalorder %s217, %s218
    %p227 = scmp.eq.s32.totalorder %s24, 0
    %p228 = por %p226, %p227
    %p229 = scmp.ne.s32.totalorder %s217, %s218
    %p230 = scmp.eq.s32.totalorder %s25, 1
    %p231 = por %p229, %p230
    %p233 = scmp.ne.s32.totalorder %s218, %s232
    %p234 = scmp.eq.s32.totalorder %s25, 0
    %p235 = por %p233, %p234
    %s237 = sadd.s32 %s236, 1
    %p240 = scmp.eq.s32.totalorder %s19, 1
    %p241 = scmp.ne.s32.totalorder %s236, %s238
    %p242 = scmp.eq.s32.totalorder %s19, 0
    %p243 = por %p241, %p242
    %p244 = scmp.ne.s32.totalorder %s236, %s238
    %p245 = scmp.eq.s32.totalorder %s24, 1
    %p246 = por %p244, %p245
    %p247 = scmp.ne.s32.totalorder %s238, %s239
    %p248 = scmp.eq.s32.totalorder %s24, 0
    %p249 = por %p247, %p248
    %p250 = scmp.ne.s32.totalorder %s238, %s239
    %p251 = scmp.eq.s32.totalorder %s25, 1
    %p252 = por %p250, %p251
    %p254 = scmp.ne.s32.totalorder %s239, %s253
    %p255 = scmp.eq.s32.totalorder %s25, 0
    %p256 = por %p254, %p255
    %s257 = ssub.s32 %s19, %s26
    %p258 = scmp.eq.s32.totalorder %s257, 0
    %s260 = sadd.s32 %s259, 1
    %s261 = scalar_select %p258, %s259, %s260
    %p264 = pneg %p258
    %p265 = scmp.eq.s32.totalorder %s19, 1
    %p266 = por %p264, %p265
    %p267 = scmp.ne.s32.totalorder %s259, %s262
    %p268 = scmp.eq.s32.totalorder %s19, 0
    %p269 = por %p267, %p268
    %p270 = scmp.ne.s32.totalorder %s259, %s262
    %p271 = scmp.eq.s32.totalorder %s24, 1
    %p272 = por %p270, %p271
    %p273 = scmp.ne.s32.totalorder %s262, %s263
    %p274 = scmp.eq.s32.totalorder %s24, 0
    %p275 = por %p273, %p274
    %p276 = scmp.ne.s32.totalorder %s262, %s263
    %p277 = scmp.eq.s32.totalorder %s25, 1
    %p278 = por %p276, %p277
    %p280 = scmp.ne.s32.totalorder %s263, %s279
    %p281 = scmp.eq.s32.totalorder %s25, 0
    %p282 = por %p280, %p281
    %s284 = sadd.s32 %s283, 1
    %p287 = scmp.eq.s32.totalorder %s19, 1
    %p288 = scmp.ne.s32.totalorder %s283, %s285
    %p289 = scmp.eq.s32.totalorder %s19, 0
    %p290 = por %p288, %p289
    %p291 = scmp.ne.s32.totalorder %s283, %s285
    %p292 = scmp.eq.s32.totalorder %s24, 1
    %p293 = por %p291, %p292
    %p294 = scmp.ne.s32.totalorder %s285, %s286
    %p295 = scmp.eq.s32.totalorder %s24, 0
    %p296 = por %p294, %p295
    %p297 = scmp.ne.s32.totalorder %s285, %s286
    %p298 = scmp.eq.s32.totalorder %s25, 1
    %p299 = por %p297, %p298
    %p301 = scmp.ne.s32.totalorder %s286, %s300
    %p302 = scmp.eq.s32.totalorder %s25, 0
    %p303 = por %p301, %p302
    %s305 = sadd.s32 %s304, 1
    %p308 = scmp.eq.s32.totalorder %s19, 1
    %p309 = scmp.ne.s32.totalorder %s304, %s306
    %p310 = scmp.eq.s32.totalorder %s19, 0
    %p311 = por %p309, %p310
    %p312 = scmp.ne.s32.totalorder %s304, %s306
    %p313 = scmp.eq.s32.totalorder %s24, 1
    %p314 = por %p312, %p313
    %p315 = scmp.ne.s32.totalorder %s306, %s307
    %p316 = scmp.eq.s32.totalorder %s24, 0
    %p317 = por %p315, %p316
    %p318 = scmp.ne.s32.totalorder %s306, %s307
    %p319 = scmp.eq.s32.totalorder %s25, 1
    %p320 = por %p318, %p319
    %p322 = scmp.ne.s32.totalorder %s307, %s321
    %p323 = scmp.eq.s32.totalorder %s25, 0
    %p324 = por %p322, %p323
    %s325 = ssub.s32 %s19, %s26
    %p326 = scmp.eq.s32.totalorder %s325, 0
    %s328 = sadd.s32 %s327, 1
    %s329 = scalar_select %p326, %s327, %s328
    %p332 = pneg %p326
    %p333 = scmp.eq.s32.totalorder %s19, 1
    %p334 = por %p332, %p333
    %p335 = scmp.ne.s32.totalorder %s327, %s330
    %p336 = scmp.eq.s32.totalorder %s19, 0
    %p337 = por %p335, %p336
    %p338 = scmp.ne.s32.totalorder %s327, %s330
    %p339 = scmp.eq.s32.totalorder %s24, 1
    %p340 = por %p338, %p339
    %p341 = scmp.ne.s32.totalorder %s330, %s331
    %p342 = scmp.eq.s32.totalorder %s24, 0
    %p343 = por %p341, %p342
    %p344 = scmp.ne.s32.totalorder %s330, %s331
    %p345 = scmp.eq.s32.totalorder %s25, 1
    %p346 = por %p344, %p345
    %p348 = scmp.ne.s32.totalorder %s331, %s347
    %p349 = scmp.eq.s32.totalorder %s25, 0
    %p350 = por %p348, %p349
    %p351 = scmp.le.s32.totalorder 1, %s19
    %p352 = scmp.lt.s32.totalorder %s19, 3
    %p353 = pnand %p351, %p352
    %p354 = pneg %p353
    // Predicated region
    $region9: #{block_forward_pallas.3} parent=5 // pred_check
      _
    $region10: #{block_forward_pallas.3} parent=5 // pred_check_branch
      %356 = sbr.rel (%p353) target = $region12
    $region11: #{block_forward_pallas.3} parent=5 // pred_region
      %s357 = ssub.s32 %s19, 1
      // Predicated region
      $region13: #{block_forward_pallas.3} parent=11 // pred_check
        %p358 = pneg %p144
      $region14: #{block_forward_pallas.3} parent=11 // pred_check_branch
        %360 = sbr.rel (%p358) target = $region16
      $region15: #{block_forward_pallas.3} parent=11 // pred_region
        _
      $region16: #{block_forward_pallas.3} parent=11 // pred_fallthru
        _
      // Predicated region
      $region17: #{block_forward_pallas.3} parent=11 // pred_check
        %p361 = pneg %p165
      $region18: #{block_forward_pallas.3} parent=11 // pred_check_branch
        %363 = sbr.rel (%p361) target = $region20
      $region19: #{block_forward_pallas.3} parent=11 // pred_region
        _
      $region20: #{block_forward_pallas.3} parent=11 // pred_fallthru
        _
      // Predicated region
      $region21: #{block_forward_pallas.3} parent=11 // pred_check
        %p364 = pneg %p186
      $region22: #{block_forward_pallas.3} parent=11 // pred_check_branch
        %366 = sbr.rel (%p364) target = $region24
      $region23: #{block_forward_pallas.3} parent=11 // pred_region
        _
      $region24: #{block_forward_pallas.3} parent=11 // pred_fallthru
        _
      // Predicated region
      $region25: #{block_forward_pallas.3} parent=11 // pred_check
        %p367 = pneg %p207
      $region26: #{block_forward_pallas.3} parent=11 // pred_check_branch
        %369 = sbr.rel (%p367) target = $region28
      $region27: #{block_forward_pallas.3} parent=11 // pred_region
        _
      $region28: #{block_forward_pallas.3} parent=11 // pred_fallthru
        _
      // Predicated region
      $region29: #{block_forward_pallas.3} parent=11 // pred_check
        %p370 = pneg %p228
      $region30: #{block_forward_pallas.3} parent=11 // pred_check_branch
        %372 = sbr.rel (%p370) target = $region32
      $region31: #{block_forward_pallas.3} parent=11 // pred_region
        _
      $region32: #{block_forward_pallas.3} parent=11 // pred_fallthru
        _
      // Predicated region
      $region33: #{block_forward_pallas.3} parent=11 // pred_check
        %p373 = pneg %p249
      $region34: #{block_forward_pallas.3} parent=11 // pred_check_branch
        %375 = sbr.rel (%p373) target = $region36
      $region35: #{block_forward_pallas.3} parent=11 // pred_region
        _
      $region36: #{block_forward_pallas.3} parent=11 // pred_fallthru
        _
      // Predicated region
      $region37: #{block_forward_pallas.3} parent=11 // pred_check
        %p376 = pneg %p296
      $region38: #{block_forward_pallas.3} parent=11 // pred_check_branch
        %378 = sbr.rel (%p376) target = $region40
      $region39: #{block_forward_pallas.3} parent=11 // pred_region
        _
      $region40: #{block_forward_pallas.3} parent=11 // pred_fallthru
        _
      // Predicated region
      $region41: #{block_forward_pallas.3} parent=11 // pred_check
        %p379 = pneg %p317
      $region42: #{block_forward_pallas.3} parent=11 // pred_check_branch
        %381 = sbr.rel (%p379) target = $region44
      $region43: #{block_forward_pallas.3} parent=11 // pred_region
        _
      $region44: #{block_forward_pallas.3} parent=11 // pred_fallthru
        _
    $region12: #{block_forward_pallas.3} parent=5 // pred_fallthru
      _
    %p382 = scmp.lt.s32.totalorder %s19, 2
    // Predicated region
    $region45: #{block_forward_pallas.3} parent=5 // pred_check
      %p383 = pneg %p382
    $region46: #{block_forward_pallas.3} parent=5 // pred_check_branch
      %385 = sbr.rel (%p383) target = $region48
    $region47: #{block_forward_pallas.3} parent=5 // pred_region
      // Predicated region
      $region49: #{block_forward_pallas.3} parent=47 // pred_check
        %p386 = pneg %p39
      $region50: #{block_forward_pallas.3} parent=47 // pred_check_branch
        %388 = sbr.rel (%p386) target = $region52
      $region51: #{block_forward_pallas.3} parent=47 // pred_region
        %p389 = scmp.lt.s32.totalorder %s19, 1
        %s390 = scalar_select %p389, %s19, 1
        %s391 = smul.addr %s390, 5
        %s392 = smul.addr %s391, 4
        %s393 = scalar_lea.vmem %s0, %s392
      $region52: #{block_forward_pallas.3} parent=47 // pred_fallthru
        _
      // Predicated region
      $region53: #{block_forward_pallas.3} parent=47 // pred_check
        %p394 = pneg %p65
      $region54: #{block_forward_pallas.3} parent=47 // pred_check_branch
        %396 = sbr.rel (%p394) target = $region56
      $region55: #{block_forward_pallas.3} parent=47 // pred_region
        %p397 = scmp.lt.s32.totalorder %s19, 1
        %s398 = scalar_select %p397, %s19, 1
        %s399 = smul.addr %s398, 5
        %s400 = smul.addr %s399, 4
        %s401 = scalar_lea.vmem %s1, %s400
      $region56: #{block_forward_pallas.3} parent=47 // pred_fallthru
        _
      // Predicated region
      $region57: #{block_forward_pallas.3} parent=47 // pred_check
        %p402 = pneg %p91
      $region58: #{block_forward_pallas.3} parent=47 // pred_check_branch
        %404 = sbr.rel (%p402) target = $region60
      $region59: #{block_forward_pallas.3} parent=47 // pred_region
        %p405 = scmp.lt.s32.totalorder %s19, 1
        %s406 = scalar_select %p405, %s19, 1
        %s407 = smul.addr %s406, 5
        %s408 = smul.addr %s407, 4
        %s409 = scalar_lea.vmem %s2, %s408
      $region60: #{block_forward_pallas.3} parent=47 // pred_fallthru
        _
      // Predicated region
      $region61: #{block_forward_pallas.3} parent=47 // pred_check
        %p410 = pneg %p117
      $region62: #{block_forward_pallas.3} parent=47 // pred_check_branch
        %412 = sbr.rel (%p410) target = $region64
      $region63: #{block_forward_pallas.3} parent=47 // pred_region
        %p413 = scmp.lt.s32.totalorder %s19, 1
        %s414 = scalar_select %p413, %s19, 1
        %s415 = smul.addr %s414, 5
        %s416 = smul.addr %s415, 4
        %s417 = scalar_lea.vmem %s3, %s416
      $region64: #{block_forward_pallas.3} parent=47 // pred_fallthru
        _
      // Predicated region
      $region65: #{block_forward_pallas.3} parent=47 // pred_check
        %p418 = pneg %p269
      $region66: #{block_forward_pallas.3} parent=47 // pred_check_branch
        %420 = sbr.rel (%p418) target = $region68
      $region67: #{block_forward_pallas.3} parent=47 // pred_region
        %p421 = scmp.lt.s32.totalorder %s19, 1
        %s422 = scalar_select %p421, %s19, 1
        %s423 = smul.addr %s422, 2
        %s424 = smul.addr %s423, 4
        %s425 = scalar_lea.vmem %s10, %s424
      $region68: #{block_forward_pallas.3} parent=47 // pred_fallthru
        _
    $region48: #{block_forward_pallas.3} parent=5 // pred_fallthru
      _
    %p426 = scmp.le.s32.totalorder 1, %s19
    %p427 = scmp.lt.s32.totalorder %s19, 3
    %p428 = pnand %p426, %p427
    %p429 = pneg %p428
    // Predicated region
    $region69: #{block_forward_pallas.3} parent=5 // pred_check
      _
    $region70: #{block_forward_pallas.3} parent=5 // pred_check_branch
      %431 = sbr.rel (%p428) target = $region72
    $region71: #{block_forward_pallas.3} parent=5 // pred_region
      %s432 = ssub.s32 %s19, 1
      %p433 = scmp.lt.s32.totalorder %s24, 1
      %s434 = scalar_select %p433, %s24, 1
      %s435 = smul.addr %s434, 5
      %s436 = smul.addr %s435, 4
      %s437 = scalar_lea.vmem %s0, %s436
      %p438 = pneg %p45
      %p439 = pneg %p42
      %p440 = scmp.lt.s32.totalorder %s24, 1
      %s441 = scalar_select %p440, %s24, 1
      %s442 = smul.addr %s441, 5
      %s443 = smul.addr %s442, 4
      %s444 = scalar_lea.vmem %s1, %s443
      %p445 = pneg %p71
      %p446 = pneg %p68
      %p447 = scmp.lt.s32.totalorder %s24, 1
      %s448 = scalar_select %p447, %s24, 1
      %s449 = smul.addr %s448, 5
      %s450 = smul.addr %s449, 4
      %s451 = scalar_lea.vmem %s2, %s450
      %p452 = pneg %p97
      %p453 = pneg %p94
      %p454 = scmp.lt.s32.totalorder %s24, 1
      %s455 = scalar_select %p454, %s24, 1
      %s456 = smul.addr %s455, 5
      %s457 = smul.addr %s456, 4
      %s458 = scalar_lea.vmem %s3, %s457
      %p459 = pneg %p123
      %p460 = pneg %p120
      %p461 = pneg %p144
      %p462 = pneg %p141
      %p463 = pneg %p165
      %p464 = pneg %p162
      %p465 = pneg %p186
      %p466 = pneg %p183
      %p467 = pneg %p207
      %p468 = pneg %p204
      %p469 = pneg %p228
      %p470 = pneg %p225
      %p471 = pneg %p249
      %p472 = pneg %p246
      %p473 = scmp.lt.s32.totalorder %s24, 1
      %s474 = scalar_select %p473, %s24, 1
      %s475 = smul.addr %s474, 2
      %s476 = smul.addr %s475, 4
      %s477 = scalar_lea.vmem %s10, %s476
      %p478 = pneg %p275
      %p479 = pneg %p272
      %p480 = pneg %p296
      %p481 = pneg %p293
      %p482 = pneg %p317
      %p483 = pneg %p314
      %p484 = pneg %p343
      %p485 = pneg %p340
      %p486 = scmp.lt.s32.totalorder %s24, 1
      %s487 = scalar_select %p486, %s24, 1
      %s488 = smul.addr %s487, 2
      %s489 = smul.addr %s488, 4
      %s490 = scalar_lea.vmem %s13, %s489
      %p491 = scmp.lt.s32.totalorder %s24, 1
      %s492 = scalar_select %p491, %s24, 1
      %s493 = smul.addr %s492, 5
      %s494 = smul.addr %s493, 4
      %s495 = scalar_lea.vmem %s0, %s494
      %p496 = scmp.lt.s32.totalorder %s24, 1
      %s497 = scalar_select %p496, %s24, 1
      %s498 = smul.addr %s497, 5
      %s499 = smul.addr %s498, 4
      %s500 = scalar_lea.vmem %s1, %s499
      %p501 = scmp.lt.s32.totalorder %s24, 1
      %s502 = scalar_select %p501, %s24, 1
      %s503 = smul.addr %s502, 5
      %s504 = smul.addr %s503, 4
      %s505 = scalar_lea.vmem %s2, %s504
      %p506 = scmp.lt.s32.totalorder %s24, 1
      %s507 = scalar_select %p506, %s24, 1
      %s508 = smul.addr %s507, 5
      %s509 = smul.addr %s508, 4
      %s510 = scalar_lea.vmem %s3, %s509
      %p511 = scmp.lt.s32.totalorder %s24, 1
      %s512 = scalar_select %p511, %s24, 1
      %s513 = smul.addr %s512, 2
      %s514 = smul.addr %s513, 4
      %s515 = scalar_lea.vmem %s10, %s514
      %p516 = scmp.lt.s32.totalorder %s24, 1
      %s517 = scalar_select %p516, %s24, 1
      %s518 = smul.addr %s517, 2
      %s519 = smul.addr %s518, 4
      %s520 = scalar_lea.vmem %s13, %s519
      %v522 = vld [vmem:[%s495] sm:$0x7]
      %v523 = vld [vmem:[%s495 + $0x4] sm:$0x7]
      %v524 = vld [vmem:[%s495 + $0x8] sm:$0x7]
      %v525 = vld [vmem:[%s495 + $0xc] sm:$0x7]
      %v526 = vld [vmem:[%s495 + $0x10] sm:$0x7]
      %v527 = vld [vmem:[%s500] sm:$0x7]
      %v528 = vld [vmem:[%s500 + $0x4] sm:$0x7]
      %v529 = vld [vmem:[%s500 + $0x8] sm:$0x7]
      %v530 = vld [vmem:[%s500 + $0xc] sm:$0x7]
      %v531 = vld [vmem:[%s500 + $0x10] sm:$0x7]
      %v532 = vld [vmem:[%s505] sm:$0x7]
      %v533 = vld [vmem:[%s505 + $0x4] sm:$0x7]
      %v534 = vld [vmem:[%s505 + $0x8] sm:$0x7]
      %v535 = vld [vmem:[%s505 + $0xc] sm:$0x7]
      %v536 = vld [vmem:[%s510] sm:$0x7]
      %v537 = vld [vmem:[%s510 + $0x4] sm:$0x7]
      %v538 = vld [vmem:[%s510 + $0x8] sm:$0x7]
      %v539 = vld [vmem:[%s510 + $0xc] sm:$0x7]
      %v545 = vunpack.c.l.s4 1983009808
      %v546 = vunpack.c.0.s8 %v545
      %v547 = vlaneseq
      %v548 = vshrl.u32 %v547, 7
      %v549 = vsub.s32 %v546, %v548
      %v550 = vrot.slane %v522, %v549
      %v551 = vcombine.high %v550, %v550
      %v553 = vunpack.c.l.s4 1983009808
      %v554 = vunpack.c.0.s8 %v553
      %v555 = vlaneseq
      %v556 = vshrl.u32 %v555, 7
      %v557 = vsub.s32 %v554, %v556
      %v558 = vrot.slane %v523, %v557
      %v559 = vcombine.high %v558, %v558
      %v561 = vunpack.c.l.s4 1983009808
      %v562 = vunpack.c.0.s8 %v561
      %v563 = vlaneseq
      %v564 = vshrl.u32 %v563, 7
      %v565 = vsub.s32 %v562, %v564
      %v566 = vrot.slane %v524, %v565
      %v567 = vcombine.high %v566, %v566
      %v569 = vunpack.c.l.s4 1983009808
      %v570 = vunpack.c.0.s8 %v569
      %v571 = vlaneseq
      %v572 = vshrl.u32 %v571, 7
      %v573 = vsub.s32 %v570, %v572
      %v574 = vrot.slane %v525, %v573
      %v575 = vcombine.high %v574, %v574
      %vm576 = vsmask.f32 1280
      %vm577 = vsmask.f32 3336
      %vm578 = vmor %vm576, %vm577
      %vm579 = vsmask.f32 5392
      %vm580 = vmor %vm578, %vm579
      %vm581 = vsmask.f32 7448
      %vm582 = vmor %vm580, %vm581
      %v584 = vshrl.u32 %v550, 16
      %v586 = vrot.slane %v584, 6
      %v587 = vshll.u32 %v550, 16
      %v589 = vrot.slane %v587, 7
      %v590 = vor.u32 %v586, %v589
      %v591 = vrot.slane %v590, 2
      %v593 = vshll.u32 %v551, 16
      %v595 = vrot.slane %v593, 7
      %v596 = vsel %vm582, %v591, %v595
      %v598 = vshrl.u32 %v558, 16
      %v600 = vrot.slane %v598, 6
      %v601 = vshll.u32 %v558, 16
      %v603 = vrot.slane %v601, 7
      %v604 = vor.u32 %v600, %v603
      %v605 = vrot.slane %v604, 2
      %v607 = vshll.u32 %v559, 16
      %v609 = vrot.slane %v607, 7
      %v610 = vsel %vm582, %v605, %v609
      %v612 = vshrl.u32 %v566, 16
      %v614 = vrot.slane %v612, 6
      %v615 = vshll.u32 %v566, 16
      %v617 = vrot.slane %v615, 7
      %v618 = vor.u32 %v614, %v617
      %v619 = vrot.slane %v618, 2
      %v621 = vshll.u32 %v567, 16
      %v623 = vrot.slane %v621, 7
      %v624 = vsel %vm582, %v619, %v623
      %v626 = vshrl.u32 %v574, 16
      %v628 = vrot.slane %v626, 6
      %v629 = vshll.u32 %v574, 16
      %v631 = vrot.slane %v629, 7
      %v632 = vor.u32 %v628, %v631
      %v633 = vrot.slane %v632, 2
      %v635 = vshll.u32 %v575, 16
      %v637 = vrot.slane %v635, 7
      %v638 = vsel %vm582, %v633, %v637
      %v644 = vunpack.c.l.s4 1983009808
      %v645 = vunpack.c.0.s8 %v644
      %v646 = vlaneseq
      %v647 = vshrl.u32 %v646, 7
      %v648 = vsub.s32 %v645, %v647
      %v649 = vrot.slane %v532, %v648
      %v650 = vcombine.high %v649, %v649
      %v652 = vunpack.c.l.s4 1983009808
      %v653 = vunpack.c.0.s8 %v652
      %v654 = vlaneseq
      %v655 = vshrl.u32 %v654, 7
      %v656 = vsub.s32 %v653, %v655
      %v657 = vrot.slane %v533, %v656
      %v658 = vcombine.high %v657, %v657
      %v660 = vunpack.c.l.s4 1983009808
      %v661 = vunpack.c.0.s8 %v660
      %v662 = vlaneseq
      %v663 = vshrl.u32 %v662, 7
      %v664 = vsub.s32 %v661, %v663
      %v665 = vrot.slane %v534, %v664
      %v666 = vcombine.high %v665, %v665
      %v668 = vunpack.c.l.s4 1983009808
      %v669 = vunpack.c.0.s8 %v668
      %v670 = vlaneseq
      %v671 = vshrl.u32 %v670, 7
      %v672 = vsub.s32 %v669, %v671
      %v673 = vrot.slane %v535, %v672
      %v674 = vcombine.high %v673, %v673
      %v676 = vshrl.u32 %v649, 16
      %v678 = vrot.slane %v676, 6
      %v679 = vshll.u32 %v649, 16
      %v681 = vrot.slane %v679, 7
      %v682 = vor.u32 %v678, %v681
      %v683 = vrot.slane %v682, 2
      %v685 = vshll.u32 %v650, 16
      %v687 = vrot.slane %v685, 7
      %v688 = vsel %vm582, %v683, %v687
      %v690 = vshrl.u32 %v657, 16
      %v692 = vrot.slane %v690, 6
      %v693 = vshll.u32 %v657, 16
      %v695 = vrot.slane %v693, 7
      %v696 = vor.u32 %v692, %v695
      %v697 = vrot.slane %v696, 2
      %v699 = vshll.u32 %v658, 16
      %v701 = vrot.slane %v699, 7
      %v702 = vsel %vm582, %v697, %v701
      %v704 = vshrl.u32 %v665, 16
      %v706 = vrot.slane %v704, 6
      %v707 = vshll.u32 %v665, 16
      %v709 = vrot.slane %v707, 7
      %v710 = vor.u32 %v706, %v709
      %v711 = vrot.slane %v710, 2
      %v713 = vshll.u32 %v666, 16
      %v715 = vrot.slane %v713, 7
      %v716 = vsel %vm582, %v711, %v715
      %v718 = vshrl.u32 %v673, 16
      %v720 = vrot.slane %v718, 6
      %v721 = vshll.u32 %v673, 16
      %v723 = vrot.slane %v721, 7
      %v724 = vor.u32 %v720, %v723
      %v725 = vrot.slane %v724, 2
      %v727 = vshll.u32 %v674, 16
      %v729 = vrot.slane %v727, 7
      %v730 = vsel %vm582, %v725, %v729
      %v733 = vunpack.c.l.s4 1983009808
      %v734 = vunpack.c.0.s8 %v733
      %v735 = vlaneseq
      %v736 = vshrl.u32 %v735, 7
      %v737 = vsub.s32 %v734, %v736
      %v738 = vrot.slane %v526, %v737
      %v739 = vcombine.high %v738, %v738
      %v741 = vshrl.u32 %v738, 16
      %v743 = vrot.slane %v741, 6
      %v744 = vshll.u32 %v738, 16
      %v746 = vrot.slane %v744, 7
      %v747 = vor.u32 %v743, %v746
      %v748 = vrot.slane %v747, 2
      %v750 = vshll.u32 %v739, 16
      %v752 = vrot.slane %v750, 7
      %v753 = vsel %vm582, %v748, %v752
      %v754 = vcombine.low %v522, %v523
      %v755 = vcombine.low %v524, %v525
      %v757 = vunpack.c.l.s4 1983009808
      %v758 = vunpack.c.0.s8 %v757
      %v759 = vlaneseq
      %v760 = vshrl.u32 %v759, 7
      %v761 = vsub.s32 %v758, %v760
      %v762 = vrot.slane %v754, %v761
      %v764 = vunpack.c.l.s4 1983009808
      %v765 = vunpack.c.0.s8 %v764
      %v766 = vlaneseq
      %v767 = vshrl.u32 %v766, 7
      %v768 = vsub.s32 %v765, %v767
      %v769 = vrot.slane %v755, %v768
      %v770 = vcombine.low %v762, %v769
      %v776 = vcombine.low %v527, %v528
      %v777 = vcombine.low %v529, %v530
      %v779 = vunpack.c.l.s4 1983009808
      %v780 = vunpack.c.0.s8 %v779
      %v781 = vlaneseq
      %v782 = vshrl.u32 %v781, 7
      %v783 = vsub.s32 %v780, %v782
      %v784 = vrot.slane %v776, %v783
      %v786 = vunpack.c.l.s4 1983009808
      %v787 = vunpack.c.0.s8 %v786
      %v788 = vlaneseq
      %v789 = vshrl.u32 %v788, 7
      %v790 = vsub.s32 %v787, %v789
      %v791 = vrot.slane %v777, %v790
      %v792 = vcombine.low %v784, %v791
      %v794 = vcombine.low %v596, %v610
      %v795 = vcombine.low %v624, %v638
      %v797 = vunpack.c.l.s4 1983009808
      %v798 = vunpack.c.0.s8 %v797
      %v799 = vlaneseq
      %v800 = vshrl.u32 %v799, 7
      %v801 = vsub.s32 %v798, %v800
      %v802 = vrot.slane %v794, %v801
      %v804 = vunpack.c.l.s4 1983009808
      %v805 = vunpack.c.0.s8 %v804
      %v806 = vlaneseq
      %v807 = vshrl.u32 %v806, 7
      %v808 = vsub.s32 %v805, %v807
      %v809 = vrot.slane %v795, %v808
      %v810 = vcombine.low %v802, %v809
      %v812 = vcombine.low %v532, %v533
      %v813 = vcombine.low %v534, %v535
      %v815 = vunpack.c.l.s4 1983009808
      %v816 = vunpack.c.0.s8 %v815
      %v817 = vlaneseq
      %v818 = vshrl.u32 %v817, 7
      %v819 = vsub.s32 %v816, %v818
      %v820 = vrot.slane %v812, %v819
      %v822 = vunpack.c.l.s4 1983009808
      %v823 = vunpack.c.0.s8 %v822
      %v824 = vlaneseq
      %v825 = vshrl.u32 %v824, 7
      %v826 = vsub.s32 %v823, %v825
      %v827 = vrot.slane %v813, %v826
      %v828 = vcombine.low %v820, %v827
      %v834 = vcombine.low %v536, %v537
      %v835 = vcombine.low %v538, %v539
      %v837 = vunpack.c.l.s4 1983009808
      %v838 = vunpack.c.0.s8 %v837
      %v839 = vlaneseq
      %v840 = vshrl.u32 %v839, 7
      %v841 = vsub.s32 %v838, %v840
      %v842 = vrot.slane %v834, %v841
      %v844 = vunpack.c.l.s4 1983009808
      %v845 = vunpack.c.0.s8 %v844
      %v846 = vlaneseq
      %v847 = vshrl.u32 %v846, 7
      %v848 = vsub.s32 %v845, %v847
      %v849 = vrot.slane %v835, %v848
      %v850 = vcombine.low %v842, %v849
      %v852 = vcombine.low %v688, %v702
      %v853 = vcombine.low %v716, %v730
      %v855 = vunpack.c.l.s4 1983009808
      %v856 = vunpack.c.0.s8 %v855
      %v857 = vlaneseq
      %v858 = vshrl.u32 %v857, 7
      %v859 = vsub.s32 %v856, %v858
      %v860 = vrot.slane %v852, %v859
      %v862 = vunpack.c.l.s4 1983009808
      %v863 = vunpack.c.0.s8 %v862
      %v864 = vlaneseq
      %v865 = vshrl.u32 %v864, 7
      %v866 = vsub.s32 %v863, %v865
      %v867 = vrot.slane %v853, %v866
      %v868 = vcombine.low %v860, %v867
      %v870 = vcombine.low %v523, %v524
      %v871 = vcombine.low %v525, %v526
      %v873 = vunpack.c.l.s4 1983009808
      %v874 = vunpack.c.0.s8 %v873
      %v875 = vlaneseq
      %v876 = vshrl.u32 %v875, 7
      %v877 = vsub.s32 %v874, %v876
      %v878 = vrot.slane %v870, %v877
      %v880 = vunpack.c.l.s4 1983009808
      %v881 = vunpack.c.0.s8 %v880
      %v882 = vlaneseq
      %v883 = vshrl.u32 %v882, 7
      %v884 = vsub.s32 %v881, %v883
      %v885 = vrot.slane %v871, %v884
      %v886 = vcombine.low %v878, %v885
      %v889 = vcombine.low %v528, %v529
      %v890 = vcombine.low %v530, %v531
      %v892 = vunpack.c.l.s4 1983009808
      %v893 = vunpack.c.0.s8 %v892
      %v894 = vlaneseq
      %v895 = vshrl.u32 %v894, 7
      %v896 = vsub.s32 %v893, %v895
      %v897 = vrot.slane %v889, %v896
      %v899 = vunpack.c.l.s4 1983009808
      %v900 = vunpack.c.0.s8 %v899
      %v901 = vlaneseq
      %v902 = vshrl.u32 %v901, 7
      %v903 = vsub.s32 %v900, %v902
      %v904 = vrot.slane %v890, %v903
      %v905 = vcombine.low %v897, %v904
      %v907 = vcombine.low %v610, %v624
      %v908 = vcombine.low %v638, %v753
      %v910 = vunpack.c.l.s4 1983009808
      %v911 = vunpack.c.0.s8 %v910
      %v912 = vlaneseq
      %v913 = vshrl.u32 %v912, 7
      %v914 = vsub.s32 %v911, %v913
      %v915 = vrot.slane %v907, %v914
      %v917 = vunpack.c.l.s4 1983009808
      %v918 = vunpack.c.0.s8 %v917
      %v919 = vlaneseq
      %v920 = vshrl.u32 %v919, 7
      %v921 = vsub.s32 %v918, %v920
      %v922 = vrot.slane %v908, %v921
      %v923 = vcombine.low %v915, %v922
      %v925 = vld [vmem:[%s4] sm:$0xf]
      %v926 = vld [vmem:[%s4 + $0x4] sm:$0xf]
      %v927 = vld [vmem:[%s4 + $0x8] sm:$0xf]
      %v928 = vld [vmem:[%s4 + $0xc] sm:$0xf]
      %v929 = vld [vmem:[%s4 + $0x10] sm:$0xf]
      %v930 = vld [vmem:[%s4 + $0x14] sm:$0xf]
      %v931 = vld [vmem:[%s4 + $0x18] sm:$0xf]
      %v932 = vld [vmem:[%s4 + $0x1c] sm:$0xf]
      %v933 = vld [vmem:[%s4 + $0x20] sm:$0xf]
      %v934 = vld [vmem:[%s4 + $0x24] sm:$0xf]
      %v935 = vld [vmem:[%s4 + $0x28] sm:$0xf]
      %v936 = vld [vmem:[%s4 + $0x2c] sm:$0xf]
      %v937 = vld [vmem:[%s4 + $0x30] sm:$0xf]
      %v938 = vld [vmem:[%s4 + $0x34] sm:$0xf]
      %v939 = vld [vmem:[%s4 + $0x38] sm:$0xf]
      %v940 = vld [vmem:[%s4 + $0x3c] sm:$0xf]
      %v941 = vld [vmem:[%s4 + $0x40] sm:$0xf]
      %v942 = vld [vmem:[%s4 + $0x44] sm:$0xf]
      %v943 = vld [vmem:[%s4 + $0x48] sm:$0xf]
      %v944 = vld [vmem:[%s4 + $0x4c] sm:$0xf]
      %v945 = vld [vmem:[%s4 + $0x50] sm:$0xf]
      %v946 = vld [vmem:[%s4 + $0x54] sm:$0xf]
      %v947 = vld [vmem:[%s4 + $0x58] sm:$0xf]
      %v948 = vld [vmem:[%s4 + $0x5c] sm:$0xf]
      %v949 = vld [vmem:[%s4 + $0x60] sm:$0xf]
      %v950 = vld [vmem:[%s4 + $0x64] sm:$0xf]
      %v951 = vld [vmem:[%s4 + $0x68] sm:$0xf]
      %v952 = vld [vmem:[%s4 + $0x6c] sm:$0xf]
      %v953 = vld [vmem:[%s4 + $0x70] sm:$0xf]
      %v954 = vld [vmem:[%s4 + $0x74] sm:$0xf]
      %v955 = vld [vmem:[%s4 + $0x78] sm:$0xf]
      %v956 = vld [vmem:[%s4 + $0x7c] sm:$0xf]
      %v957 = vld [vmem:[%s4 + $0x80] sm:$0xf]
      %v958 = vld [vmem:[%s4 + $0x84] sm:$0xf]
      %v959 = vld [vmem:[%s4 + $0x88] sm:$0xf]
      %v960 = vld [vmem:[%s4 + $0x8c] sm:$0xf]
      %v961 = vld [vmem:[%s4 + $0x90] sm:$0xf]
      %v962 = vld [vmem:[%s4 + $0x94] sm:$0xf]
      %v963 = vld [vmem:[%s4 + $0x98] sm:$0xf]
      %v964 = vld [vmem:[%s4 + $0x9c] sm:$0xf]
      %v965 = vld [vmem:[%s4 + $0xa0] sm:$0xf]
      %v966 = vld [vmem:[%s4 + $0xa4] sm:$0xf]
      %v967 = vld [vmem:[%s4 + $0xa8] sm:$0xf]
      %v968 = vld [vmem:[%s4 + $0xac] sm:$0xf]
      %v969 = vld [vmem:[%s4 + $0xb0] sm:$0xf]
      %v970 = vld [vmem:[%s4 + $0xb4] sm:$0xf]
      %v971 = vld [vmem:[%s4 + $0xb8] sm:$0xf]
      %v972 = vld [vmem:[%s4 + $0xbc] sm:$0xf]
      %v973 = vld [vmem:[%s4 + $0xc0] sm:$0xf]
      %v974 = vld [vmem:[%s4 + $0xc4] sm:$0xf]
      %v975 = vld [vmem:[%s4 + $0xc8] sm:$0xf]
      %v976 = vld [vmem:[%s4 + $0xcc] sm:$0xf]
      %v977 = vld [vmem:[%s4 + $0xd0] sm:$0xf]
      %v978 = vld [vmem:[%s4 + $0xd4] sm:$0xf]
      %v979 = vld [vmem:[%s4 + $0xd8] sm:$0xf]
      %v980 = vld [vmem:[%s4 + $0xdc] sm:$0xf]
      %v981 = vld [vmem:[%s4 + $0xe0] sm:$0xf]
      %v982 = vld [vmem:[%s4 + $0xe4] sm:$0xf]
      %v983 = vld [vmem:[%s4 + $0xe8] sm:$0xf]
      %v984 = vld [vmem:[%s4 + $0xec] sm:$0xf]
      %v985 = vld [vmem:[%s4 + $0xf0] sm:$0xf]
      %v986 = vld [vmem:[%s4 + $0xf4] sm:$0xf]
      %v987 = vld [vmem:[%s4 + $0xf8] sm:$0xf]
      %v988 = vld [vmem:[%s4 + $0xfc] sm:$0xf]
      %v989 = vld [vmem:[%s4 + $0x100] sm:$0xf]
      %v990 = vld [vmem:[%s4 + $0x104] sm:$0xf]
      %v991 = vld [vmem:[%s4 + $0x108] sm:$0xf]
      %v992 = vld [vmem:[%s4 + $0x10c] sm:$0xf]
      %v993 = vld [vmem:[%s4 + $0x110] sm:$0xf]
      %v994 = vld [vmem:[%s4 + $0x114] sm:$0xf]
      %v995 = vld [vmem:[%s4 + $0x118] sm:$0xf]
      %v996 = vld [vmem:[%s4 + $0x11c] sm:$0xf]
      %v997 = vld [vmem:[%s4 + $0x120] sm:$0xf]
      %v998 = vld [vmem:[%s4 + $0x124] sm:$0xf]
      %v999 = vld [vmem:[%s4 + $0x128] sm:$0xf]
      %v1000 = vld [vmem:[%s4 + $0x12c] sm:$0xf]
      %v1001 = vld [vmem:[%s4 + $0x130] sm:$0xf]
      %v1002 = vld [vmem:[%s4 + $0x134] sm:$0xf]
      %v1003 = vld [vmem:[%s4 + $0x138] sm:$0xf]
      %v1004 = vld [vmem:[%s4 + $0x13c] sm:$0xf]
      %v1005 = vld [vmem:[%s4 + $0x140] sm:$0xf]
      %v1006 = vld [vmem:[%s4 + $0x144] sm:$0xf]
      %v1007 = vld [vmem:[%s4 + $0x148] sm:$0xf]
      %v1008 = vld [vmem:[%s4 + $0x14c] sm:$0xf]
      %v1009 = vld [vmem:[%s4 + $0x150] sm:$0xf]
      %v1010 = vld [vmem:[%s4 + $0x154] sm:$0xf]
      %v1011 = vld [vmem:[%s4 + $0x158] sm:$0xf]
      %v1012 = vld [vmem:[%s4 + $0x15c] sm:$0xf]
      %v1013 = vld [vmem:[%s4 + $0x160] sm:$0xf]
      %v1014 = vld [vmem:[%s4 + $0x164] sm:$0xf]
      %v1015 = vld [vmem:[%s4 + $0x168] sm:$0xf]
      %v1016 = vld [vmem:[%s4 + $0x16c] sm:$0xf]
      %v1017 = vld [vmem:[%s4 + $0x170] sm:$0xf]
      %v1018 = vld [vmem:[%s4 + $0x174] sm:$0xf]
      %v1019 = vld [vmem:[%s4 + $0x178] sm:$0xf]
      %v1020 = vld [vmem:[%s4 + $0x17c] sm:$0xf]
      %v1021 = vld [vmem:[%s4 + $0x180] sm:$0xf]
      %v1022 = vld [vmem:[%s4 + $0x184] sm:$0xf]
      %v1023 = vld [vmem:[%s4 + $0x188] sm:$0xf]
      %v1024 = vld [vmem:[%s4 + $0x18c] sm:$0xf]
      %v1025 = vld [vmem:[%s4 + $0x190] sm:$0xf]
      %v1026 = vld [vmem:[%s4 + $0x194] sm:$0xf]
      %v1027 = vld [vmem:[%s4 + $0x198] sm:$0xf]
      %v1028 = vld [vmem:[%s4 + $0x19c] sm:$0xf]
      %v1029 = vld [vmem:[%s4 + $0x1a0] sm:$0xf]
      %v1030 = vld [vmem:[%s4 + $0x1a4] sm:$0xf]
      %v1031 = vld [vmem:[%s4 + $0x1a8] sm:$0xf]
      %v1032 = vld [vmem:[%s4 + $0x1ac] sm:$0xf]
      %v1033 = vld [vmem:[%s4 + $0x1b0] sm:$0xf]
      %v1034 = vld [vmem:[%s4 + $0x1b4] sm:$0xf]
      %v1035 = vld [vmem:[%s4 + $0x1b8] sm:$0xf]
      %v1036 = vld [vmem:[%s4 + $0x1bc] sm:$0xf]
      %v1037 = vld [vmem:[%s4 + $0x1c0] sm:$0xf]
      %v1038 = vld [vmem:[%s4 + $0x1c4] sm:$0xf]
      %v1039 = vld [vmem:[%s4 + $0x1c8] sm:$0xf]
      %v1040 = vld [vmem:[%s4 + $0x1cc] sm:$0xf]
      %v1041 = vld [vmem:[%s4 + $0x1d0] sm:$0xf]
      %v1042 = vld [vmem:[%s4 + $0x1d4] sm:$0xf]
      %v1043 = vld [vmem:[%s4 + $0x1d8] sm:$0xf]
      %v1044 = vld [vmem:[%s4 + $0x1dc] sm:$0xf]
      %v1045 = vld [vmem:[%s4 + $0x1e0] sm:$0xf]
      %v1046 = vld [vmem:[%s4 + $0x1e4] sm:$0xf]
      %v1047 = vld [vmem:[%s4 + $0x1e8] sm:$0xf]
      %v1048 = vld [vmem:[%s4 + $0x1ec] sm:$0xf]
      %v1049 = vld [vmem:[%s4 + $0x1f0] sm:$0xf]
      %v1050 = vld [vmem:[%s4 + $0x1f4] sm:$0xf]
      %v1051 = vld [vmem:[%s4 + $0x1f8] sm:$0xf]
      %v1052 = vld [vmem:[%s4 + $0x1fc] sm:$0xf]
      %v1053 = vld [vmem:[%s4 + $0x200] sm:$0xf]
      %v1054 = vld [vmem:[%s4 + $0x204] sm:$0xf]
      %v1055 = vld [vmem:[%s4 + $0x208] sm:$0xf]
      %v1056 = vld [vmem:[%s4 + $0x20c] sm:$0xf]
      %v1057 = vld [vmem:[%s4 + $0x210] sm:$0xf]
      %v1058 = vld [vmem:[%s4 + $0x214] sm:$0xf]
      %v1059 = vld [vmem:[%s4 + $0x218] sm:$0xf]
      %v1060 = vld [vmem:[%s4 + $0x21c] sm:$0xf]
      %v1061 = vld [vmem:[%s4 + $0x220] sm:$0xf]
      %v1062 = vld [vmem:[%s4 + $0x224] sm:$0xf]
      %v1063 = vld [vmem:[%s4 + $0x228] sm:$0xf]
      %v1064 = vld [vmem:[%s4 + $0x22c] sm:$0xf]
      %v1065 = vld [vmem:[%s4 + $0x230] sm:$0xf]
      %v1066 = vld [vmem:[%s4 + $0x234] sm:$0xf]
      %v1067 = vld [vmem:[%s4 + $0x238] sm:$0xf]
      %v1068 = vld [vmem:[%s4 + $0x23c] sm:$0xf]
      %v1069 = vld [vmem:[%s5] sm:$0x1]
      %v1071 = vlaneseq
      %v1072 = vshrl.u32 %v1071, 7
      %v1073 = vsub.s32 0, %v1072
      %v1074 = vrot.slane %v1069, %v1073
      %v1220 = vunpack.c.l.b16 %v925
      %v1221 = vunpack.c.l.b16 %v926
      %v1222 = vunpack.c.l.b16 %v927
      %v1223 = vunpack.c.l.b16 %v928
      %v1224 = vunpack.c.l.b16 %v929
      %v1225 = vunpack.c.l.b16 %v930
      %v1226 = vunpack.c.l.b16 %v931
      %v1227 = vunpack.c.l.b16 %v932
      %v1228 = vunpack.c.l.b16 %v933
      %v1229 = vunpack.c.l.b16 %v934
      %v1230 = vunpack.c.l.b16 %v935
      %v1231 = vunpack.c.l.b16 %v936
      %v1232 = vunpack.c.l.b16 %v937
      %v1233 = vunpack.c.l.b16 %v938
      %v1234 = vunpack.c.l.b16 %v939
      %v1235 = vunpack.c.l.b16 %v940
      %v1236 = vunpack.c.l.b16 %v941
      %v1237 = vunpack.c.l.b16 %v942
      %v1238 = vunpack.c.l.b16 %v943
      %v1239 = vunpack.c.l.b16 %v944
      %v1240 = vunpack.c.l.b16 %v945
      %v1241 = vunpack.c.l.b16 %v946
      %v1242 = vunpack.c.l.b16 %v947
      %v1243 = vunpack.c.l.b16 %v948
      %v1244 = vunpack.c.l.b16 %v949
      %v1245 = vunpack.c.l.b16 %v950
      %v1246 = vunpack.c.l.b16 %v951
      %v1247 = vunpack.c.l.b16 %v952
      %v1248 = vunpack.c.l.b16 %v953
      %v1249 = vunpack.c.l.b16 %v954
      %v1250 = vunpack.c.l.b16 %v955
      %v1251 = vunpack.c.l.b16 %v956
      %v1252 = vunpack.c.l.b16 %v957
      %v1253 = vunpack.c.l.b16 %v958
      %v1254 = vunpack.c.l.b16 %v959
      %v1255 = vunpack.c.l.b16 %v960
      %v1256 = vunpack.c.l.b16 %v961
      %v1257 = vunpack.c.l.b16 %v962
      %v1258 = vunpack.c.l.b16 %v963
      %v1259 = vunpack.c.l.b16 %v964
      %v1260 = vunpack.c.l.b16 %v965
      %v1261 = vunpack.c.l.b16 %v966
      %v1262 = vunpack.c.l.b16 %v967
      %v1263 = vunpack.c.l.b16 %v968
      %v1264 = vunpack.c.l.b16 %v969
      %v1265 = vunpack.c.l.b16 %v970
      %v1266 = vunpack.c.l.b16 %v971
      %v1267 = vunpack.c.l.b16 %v972
      %v1268 = vunpack.c.l.b16 %v973
      %v1269 = vunpack.c.l.b16 %v974
      %v1270 = vunpack.c.l.b16 %v975
      %v1271 = vunpack.c.l.b16 %v976
      %v1272 = vunpack.c.l.b16 %v977
      %v1273 = vunpack.c.l.b16 %v978
      %v1274 = vunpack.c.l.b16 %v979
      %v1275 = vunpack.c.l.b16 %v980
      %v1276 = vunpack.c.l.b16 %v981
      %v1277 = vunpack.c.l.b16 %v982
      %v1278 = vunpack.c.l.b16 %v983
      %v1279 = vunpack.c.l.b16 %v984
      %v1280 = vunpack.c.l.b16 %v985
      %v1281 = vunpack.c.l.b16 %v986
      %v1282 = vunpack.c.l.b16 %v987
      %v1283 = vunpack.c.l.b16 %v988
      %v1284 = vunpack.c.l.b16 %v989
      %v1285 = vunpack.c.l.b16 %v990
      %v1286 = vunpack.c.l.b16 %v991
      %v1287 = vunpack.c.l.b16 %v992
      %v1288 = vunpack.c.l.b16 %v993
      %v1289 = vunpack.c.l.b16 %v994
      %v1290 = vunpack.c.l.b16 %v995
      %v1291 = vunpack.c.l.b16 %v996
      %v1292 = vunpack.c.l.b16 %v997
      %v1293 = vunpack.c.l.b16 %v998
      %v1294 = vunpack.c.l.b16 %v999
      %v1295 = vunpack.c.l.b16 %v1000
      %v1296 = vunpack.c.l.b16 %v1001
      %v1297 = vunpack.c.l.b16 %v1002
      %v1298 = vunpack.c.l.b16 %v1003
      %v1299 = vunpack.c.l.b16 %v1004
      %v1300 = vunpack.c.l.b16 %v1005
      %v1301 = vunpack.c.l.b16 %v1006
      %v1302 = vunpack.c.l.b16 %v1007
      %v1303 = vunpack.c.l.b16 %v1008
      %v1304 = vunpack.c.l.b16 %v1009
      %v1305 = vunpack.c.l.b16 %v1010
      %v1306 = vunpack.c.l.b16 %v1011
      %v1307 = vunpack.c.l.b16 %v1012
      %v1308 = vunpack.c.l.b16 %v1013
      %v1309 = vunpack.c.l.b16 %v1014
      %v1310 = vunpack.c.l.b16 %v1015
      %v1311 = vunpack.c.l.b16 %v1016
      %v1312 = vunpack.c.l.b16 %v1017
      %v1313 = vunpack.c.l.b16 %v1018
      %v1314 = vunpack.c.l.b16 %v1019
      %v1315 = vunpack.c.l.b16 %v1020
      %v1316 = vunpack.c.l.b16 %v1021
      %v1317 = vunpack.c.l.b16 %v1022
      %v1318 = vunpack.c.l.b16 %v1023
      %v1319 = vunpack.c.l.b16 %v1024
      %v1320 = vunpack.c.l.b16 %v1025
      %v1321 = vunpack.c.l.b16 %v1026
      %v1322 = vunpack.c.l.b16 %v1027
      %v1323 = vunpack.c.l.b16 %v1028
      %v1324 = vunpack.c.l.b16 %v1029
      %v1325 = vunpack.c.l.b16 %v1030
      %v1326 = vunpack.c.l.b16 %v1031
      %v1327 = vunpack.c.l.b16 %v1032
      %v1328 = vunpack.c.l.b16 %v1033
      %v1329 = vunpack.c.l.b16 %v1034
      %v1330 = vunpack.c.l.b16 %v1035
      %v1331 = vunpack.c.l.b16 %v1036
      %v1332 = vunpack.c.l.b16 %v1037
      %v1333 = vunpack.c.l.b16 %v1038
      %v1334 = vunpack.c.l.b16 %v1039
      %v1335 = vunpack.c.l.b16 %v1040
      %v1336 = vunpack.c.l.b16 %v1041
      %v1337 = vunpack.c.l.b16 %v1042
      %v1338 = vunpack.c.l.b16 %v1043
      %v1339 = vunpack.c.l.b16 %v1044
      %v1340 = vunpack.c.l.b16 %v1045
      %v1341 = vunpack.c.l.b16 %v1046
      %v1342 = vunpack.c.l.b16 %v1047
      %v1343 = vunpack.c.l.b16 %v1048
      %v1344 = vunpack.c.l.b16 %v1049
      %v1345 = vunpack.c.l.b16 %v1050
      %v1346 = vunpack.c.l.b16 %v1051
      %v1347 = vunpack.c.l.b16 %v1052
      %v1348 = vunpack.c.l.b16 %v1053
      %v1349 = vunpack.c.l.b16 %v1054
      %v1350 = vunpack.c.l.b16 %v1055
      %v1351 = vunpack.c.l.b16 %v1056
      %v1352 = vunpack.c.l.b16 %v1057
      %v1353 = vunpack.c.l.b16 %v1058
      %v1354 = vunpack.c.l.b16 %v1059
      %v1355 = vunpack.c.l.b16 %v1060
      %v1356 = vunpack.c.l.b16 %v1061
      %v1357 = vunpack.c.l.b16 %v1062
      %v1358 = vunpack.c.l.b16 %v1063
      %v1359 = vunpack.c.l.b16 %v1064
      %v1360 = vunpack.c.l.b16 %v1065
      %v1361 = vunpack.c.l.b16 %v1066
      %v1362 = vunpack.c.l.b16 %v1067
      %v1363 = vunpack.c.l.b16 %v1068
      %v1364 = vpack.c.b16 %v1221, %v1220
      %v1365 = vpack.c.b16 %v1223, %v1222
      %v1366 = vpack.c.b16 %v1225, %v1224
      %v1367 = vpack.c.b16 %v1227, %v1226
      %v1368 = vpack.c.b16 %v1229, %v1228
      %v1369 = vpack.c.b16 %v1231, %v1230
      %v1370 = vpack.c.b16 %v1233, %v1232
      %v1371 = vpack.c.b16 %v1235, %v1234
      %v1372 = vpack.c.b16 %v1237, %v1236
      %v1373 = vpack.c.b16 %v1239, %v1238
      %v1374 = vpack.c.b16 %v1241, %v1240
      %v1375 = vpack.c.b16 %v1243, %v1242
      %v1376 = vpack.c.b16 %v1245, %v1244
      %v1377 = vpack.c.b16 %v1247, %v1246
      %v1378 = vpack.c.b16 %v1249, %v1248
      %v1379 = vpack.c.b16 %v1251, %v1250
      %v1380 = vpack.c.b16 %v1253, %v1252
      %v1381 = vpack.c.b16 %v1255, %v1254
      %v1382 = vpack.c.b16 %v1257, %v1256
      %v1383 = vpack.c.b16 %v1259, %v1258
      %v1384 = vpack.c.b16 %v1261, %v1260
      %v1385 = vpack.c.b16 %v1263, %v1262
      %v1386 = vpack.c.b16 %v1265, %v1264
      %v1387 = vpack.c.b16 %v1267, %v1266
      %v1388 = vpack.c.b16 %v1269, %v1268
      %v1389 = vpack.c.b16 %v1271, %v1270
      %v1390 = vpack.c.b16 %v1273, %v1272
      %v1391 = vpack.c.b16 %v1275, %v1274
      %v1392 = vpack.c.b16 %v1277, %v1276
      %v1393 = vpack.c.b16 %v1279, %v1278
      %v1394 = vpack.c.b16 %v1281, %v1280
      %v1395 = vpack.c.b16 %v1283, %v1282
      %v1396 = vpack.c.b16 %v1285, %v1284
      %v1397 = vpack.c.b16 %v1287, %v1286
      %v1398 = vpack.c.b16 %v1289, %v1288
      %v1399 = vpack.c.b16 %v1291, %v1290
      %v1400 = vpack.c.b16 %v1293, %v1292
      %v1401 = vpack.c.b16 %v1295, %v1294
      %v1402 = vpack.c.b16 %v1297, %v1296
      %v1403 = vpack.c.b16 %v1299, %v1298
      %v1404 = vpack.c.b16 %v1301, %v1300
      %v1405 = vpack.c.b16 %v1303, %v1302
      %v1406 = vpack.c.b16 %v1305, %v1304
      %v1407 = vpack.c.b16 %v1307, %v1306
      %v1408 = vpack.c.b16 %v1309, %v1308
      %v1409 = vpack.c.b16 %v1311, %v1310
      %v1410 = vpack.c.b16 %v1313, %v1312
      %v1411 = vpack.c.b16 %v1315, %v1314
      %v1412 = vpack.c.b16 %v1317, %v1316
      %v1413 = vpack.c.b16 %v1319, %v1318
      %v1414 = vpack.c.b16 %v1321, %v1320
      %v1415 = vpack.c.b16 %v1323, %v1322
      %v1416 = vpack.c.b16 %v1325, %v1324
      %v1417 = vpack.c.b16 %v1327, %v1326
      %v1418 = vpack.c.b16 %v1329, %v1328
      %v1419 = vpack.c.b16 %v1331, %v1330
      %v1420 = vpack.c.b16 %v1333, %v1332
      %v1421 = vpack.c.b16 %v1335, %v1334
      %v1422 = vpack.c.b16 %v1337, %v1336
      %v1423 = vpack.c.b16 %v1339, %v1338
      %v1424 = vpack.c.b16 %v1341, %v1340
      %v1425 = vpack.c.b16 %v1343, %v1342
      %v1426 = vpack.c.b16 %v1345, %v1344
      %v1427 = vpack.c.b16 %v1347, %v1346
      %v1428 = vpack.c.b16 %v1349, %v1348
      %v1429 = vpack.c.b16 %v1351, %v1350
      %v1430 = vpack.c.b16 %v1353, %v1352
      %v1431 = vpack.c.b16 %v1355, %v1354
      %v1432 = vpack.c.b16 %v1357, %v1356
      %v1433 = vpack.c.b16 %v1359, %v1358
      %v1434 = vpack.c.b16 %v1361, %v1360
      %v1435 = vpack.c.b16 %v1363, %v1362
      %1508 = vmatprep.subr.bf16.mxu0 0
      %1509 = vmatpush1.bf16.msra.mxu0 %v1371
      %1510 = vmatprep.subr.bf16.mxu0 0
      %1511 = vmatpush1.bf16.msra.mxu0 %v1370
      %1512 = vmatprep.subr.bf16.mxu0 0
      %1513 = vmatpush1.bf16.msra.mxu0 %v1369
      %1514 = vmatprep.subr.bf16.mxu0 0
      %1515 = vmatpush1.bf16.msra.mxu0 %v1368
      %1516 = vmatprep.subr.bf16.mxu0 0
      %1517 = vmatpush1.bf16.msra.mxu0 %v1367
      %1518 = vmatprep.subr.bf16.mxu0 0
      %1519 = vmatpush1.bf16.msra.mxu0 %v1366
      %1520 = vmatprep.subr.bf16.mxu0 0
      %1521 = vmatpush1.bf16.msra.mxu0 %v1365
      %1522 = vmatprep.subr.bf16.mxu0 0
      %1523 = vmatpush1.bf16.msra.mxu0 %v1364
      %1524 = vmatprep.subr.bf16.mxu0 0
      %1525 = vmatpush2.bf16.msra.mxu0 %v1379
      %1526 = vmatprep.subr.bf16.mxu0 0
      %1527 = vmatpush2.bf16.msra.mxu0 %v1378
      %1528 = vmatprep.subr.bf16.mxu0 0
      %1529 = vmatpush2.bf16.msra.mxu0 %v1377
      %1530 = vmatprep.subr.bf16.mxu0 0
      %1531 = vmatpush2.bf16.msra.mxu0 %v1376
      %1532 = vmatprep.subr.bf16.mxu0 0
      %1533 = vmatpush2.bf16.msra.mxu0 %v1375
      %1534 = vmatprep.subr.bf16.mxu0 0
      %1535 = vmatpush2.bf16.msra.mxu0 %v1374
      %1536 = vmatprep.subr.bf16.mxu0 0
      %1537 = vmatpush2.bf16.msra.mxu0 %v1373
      %1538 = vmatprep.subr.bf16.mxu0 0
      %1539 = vmatpush2.bf16.msra.mxu0 %v1372
      %1540 = vmatprep.mubr.bf16.mxu0 %v792
      %1541 = vmatmul.mubr.bf16.gmra.mxu0 %v770
      %v1542 = vpop.f32.mrf.mxu0
      %v1543 = vadd.f32 %v1074, %v1542
      %v1544 = vpop.f32.mrf.mxu0
      %v1545 = vpop.f32.mrf.mxu0
      %v1546 = vadd.f32 %v1074, %v1545
      %v1547 = vpop.f32.mrf.mxu0
      %1548 = vdwg.mxu0
      %1549 = vmatprep.subr.bf16.mxu0 0
      %1550 = vmatpush1.bf16.msra.mxu0 %v1387
      %1551 = vmatprep.subr.bf16.mxu0 0
      %1552 = vmatpush1.bf16.msra.mxu0 %v1386
      %1553 = vmatprep.subr.bf16.mxu0 0
      %1554 = vmatpush1.bf16.msra.mxu0 %v1385
      %1555 = vmatprep.subr.bf16.mxu0 0
      %1556 = vmatpush1.bf16.msra.mxu0 %v1384
      %1557 = vmatprep.subr.bf16.mxu0 0
      %1558 = vmatpush1.bf16.msra.mxu0 %v1383
      %1559 = vmatprep.subr.bf16.mxu0 0
      %1560 = vmatpush1.bf16.msra.mxu0 %v1382
      %1561 = vmatprep.subr.bf16.mxu0 0
      %1562 = vmatpush1.bf16.msra.mxu0 %v1381
      %1563 = vmatprep.subr.bf16.mxu0 0
      %1564 = vmatpush1.bf16.msra.mxu0 %v1380
      %1565 = vmatprep.subr.bf16.mxu0 0
      %1566 = vmatpush2.bf16.msra.mxu0 %v1395
      %1567 = vmatprep.subr.bf16.mxu0 0
      %1568 = vmatpush2.bf16.msra.mxu0 %v1394
      %1569 = vmatprep.subr.bf16.mxu0 0
      %1570 = vmatpush2.bf16.msra.mxu0 %v1393
      %1571 = vmatprep.subr.bf16.mxu0 0
      %1572 = vmatpush2.bf16.msra.mxu0 %v1392
      %1573 = vmatprep.subr.bf16.mxu0 0
      %1574 = vmatpush2.bf16.msra.mxu0 %v1391
      %1575 = vmatprep.subr.bf16.mxu0 0
      %1576 = vmatpush2.bf16.msra.mxu0 %v1390
      %1577 = vmatprep.subr.bf16.mxu0 0
      %1578 = vmatpush2.bf16.msra.mxu0 %v1389
      %1579 = vmatprep.subr.bf16.mxu0 0
      %1580 = vmatpush2.bf16.msra.mxu0 %v1388
      %1581 = vmatprep.mubr.bf16.mxu0 %v828
      %1582 = vmatmul.mubr.bf16.gmra.mxu0 %v810
      %v1583 = vpop.f32.mrf.mxu0
      %v1584 = vadd.f32 %v1543, %v1583
      %v1585 = vpop.f32.mrf.mxu0
      %v1586 = vpop.f32.mrf.mxu0
      %v1587 = vadd.f32 %v1546, %v1586
      %v1588 = vpop.f32.mrf.mxu0
      %1589 = vdwg.mxu0
      %1590 = vmatprep.subr.bf16.mxu0 0
      %1591 = vmatpush1.bf16.msra.mxu0 %v1403
      %1592 = vmatprep.subr.bf16.mxu0 0
      %1593 = vmatpush1.bf16.msra.mxu0 %v1402
      %1594 = vmatprep.subr.bf16.mxu0 0
      %1595 = vmatpush1.bf16.msra.mxu0 %v1401
      %1596 = vmatprep.subr.bf16.mxu0 0
      %1597 = vmatpush1.bf16.msra.mxu0 %v1400
      %1598 = vmatprep.subr.bf16.mxu0 0
      %1599 = vmatpush1.bf16.msra.mxu0 %v1399
      %1600 = vmatprep.subr.bf16.mxu0 0
      %1601 = vmatpush1.bf16.msra.mxu0 %v1398
      %1602 = vmatprep.subr.bf16.mxu0 0
      %1603 = vmatpush1.bf16.msra.mxu0 %v1397
      %1604 = vmatprep.subr.bf16.mxu0 0
      %1605 = vmatpush1.bf16.msra.mxu0 %v1396
      %1606 = vmatprep.subr.bf16.mxu0 0
      %1607 = vmatpush2.bf16.msra.mxu0 %v1411
      %1608 = vmatprep.subr.bf16.mxu0 0
      %1609 = vmatpush2.bf16.msra.mxu0 %v1410
      %1610 = vmatprep.subr.bf16.mxu0 0
      %1611 = vmatpush2.bf16.msra.mxu0 %v1409
      %1612 = vmatprep.subr.bf16.mxu0 0
      %1613 = vmatpush2.bf16.msra.mxu0 %v1408
      %1614 = vmatprep.subr.bf16.mxu0 0
      %1615 = vmatpush2.bf16.msra.mxu0 %v1407
      %1616 = vmatprep.subr.bf16.mxu0 0
      %1617 = vmatpush2.bf16.msra.mxu0 %v1406
      %1618 = vmatprep.subr.bf16.mxu0 0
      %1619 = vmatpush2.bf16.msra.mxu0 %v1405
      %1620 = vmatprep.subr.bf16.mxu0 0
      %1621 = vmatpush2.bf16.msra.mxu0 %v1404
      %1622 = vmatprep.mubr.bf16.mxu0 %v868
      %1623 = vmatmul.mubr.bf16.gmra.mxu0 %v850
      %v1624 = vpop.f32.mrf.mxu0
      %v1625 = vadd.f32 %v1584, %v1624
      %v1626 = vpop.f32.mrf.mxu0
      %v1627 = vpop.f32.mrf.mxu0
      %v1628 = vadd.f32 %v1587, %v1627
      %v1629 = vpop.f32.mrf.mxu0
      %1630 = vdwg.mxu0
      %1631 = vmatprep.subr.bf16.mxu0 0
      %1632 = vmatpush1.bf16.msra.mxu0 %v1419
      %1633 = vmatprep.subr.bf16.mxu0 0
      %1634 = vmatpush1.bf16.msra.mxu0 %v1418
      %1635 = vmatprep.subr.bf16.mxu0 0
      %1636 = vmatpush1.bf16.msra.mxu0 %v1417
      %1637 = vmatprep.subr.bf16.mxu0 0
      %1638 = vmatpush1.bf16.msra.mxu0 %v1416
      %1639 = vmatprep.subr.bf16.mxu0 0
      %1640 = vmatpush1.bf16.msra.mxu0 %v1415
      %1641 = vmatprep.subr.bf16.mxu0 0
      %1642 = vmatpush1.bf16.msra.mxu0 %v1414
      %1643 = vmatprep.subr.bf16.mxu0 0
      %1644 = vmatpush1.bf16.msra.mxu0 %v1413
      %1645 = vmatprep.subr.bf16.mxu0 0
      %1646 = vmatpush1.bf16.msra.mxu0 %v1412
      %1647 = vmatprep.subr.bf16.mxu0 0
      %1648 = vmatpush2.bf16.msra.mxu0 %v1427
      %1649 = vmatprep.subr.bf16.mxu0 0
      %1650 = vmatpush2.bf16.msra.mxu0 %v1426
      %1651 = vmatprep.subr.bf16.mxu0 0
      %1652 = vmatpush2.bf16.msra.mxu0 %v1425
      %1653 = vmatprep.subr.bf16.mxu0 0
      %1654 = vmatpush2.bf16.msra.mxu0 %v1424
      %1655 = vmatprep.subr.bf16.mxu0 0
      %1656 = vmatpush2.bf16.msra.mxu0 %v1423
      %1657 = vmatprep.subr.bf16.mxu0 0
      %1658 = vmatpush2.bf16.msra.mxu0 %v1422
      %1659 = vmatprep.subr.bf16.mxu0 0
      %1660 = vmatpush2.bf16.msra.mxu0 %v1421
      %1661 = vmatprep.subr.bf16.mxu0 0
      %1662 = vmatpush2.bf16.msra.mxu0 %v1420
      %1663 = vmatprep.mubr.bf16.mxu0 %v905
      %1664 = vmatmul.mubr.bf16.gmra.mxu0 %v886
      %v1665 = vpop.f32.mrf.mxu0
      %v1666 = vadd.f32 %v1625, %v1665
      %v1667 = vpop.f32.mrf.mxu0
      %v1668 = vpop.f32.mrf.mxu0
      %v1669 = vadd.f32 %v1628, %v1668
      %v1670 = vpop.f32.mrf.mxu0
      %1671 = vdwg.mxu0
      %1672 = vmatprep.subr.bf16.mxu0 0
      %1673 = vmatpush1.bf16.msra.mxu0 %v1435
      %1674 = vmatprep.subr.bf16.mxu0 0
      %1675 = vmatpush1.bf16.msra.mxu0 %v1434
      %1676 = vmatprep.subr.bf16.mxu0 0
      %1677 = vmatpush1.bf16.msra.mxu0 %v1433
      %1678 = vmatprep.subr.bf16.mxu0 0
      %1679 = vmatpush1.bf16.msra.mxu0 %v1432
      %1680 = vmatprep.subr.bf16.mxu0 0
      %1681 = vmatpush1.bf16.msra.mxu0 %v1431
      %1682 = vmatprep.subr.bf16.mxu0 0
      %1683 = vmatpush1.bf16.msra.mxu0 %v1430
      %1684 = vmatprep.subr.bf16.mxu0 0
      %1685 = vmatpush1.bf16.msra.mxu0 %v1429
      %1686 = vmatprep.subr.bf16.mxu0 0
      %1687 = vmatpush1.bf16.msra.mxu0 %v1428
      %1688 = vmatprep.subr.bf16.mxu0 0
      %1689 = vmatpush2.bf16.msra.mxu0 0
      %1690 = vmatprep.subr.bf16.mxu0 0
      %1691 = vmatpush2.bf16.msra.mxu0 0
      %1692 = vmatprep.subr.bf16.mxu0 0
      %1693 = vmatpush2.bf16.msra.mxu0 0
      %1694 = vmatprep.subr.bf16.mxu0 0
      %1695 = vmatpush2.bf16.msra.mxu0 0
      %1696 = vmatprep.subr.bf16.mxu0 0
      %1697 = vmatpush2.bf16.msra.mxu0 0
      %1698 = vmatprep.subr.bf16.mxu0 0
      %1699 = vmatpush2.bf16.msra.mxu0 0
      %1700 = vmatprep.subr.bf16.mxu0 0
      %1701 = vmatpush2.bf16.msra.mxu0 0
      %1702 = vmatprep.subr.bf16.mxu0 0
      %1703 = vmatpush2.bf16.msra.mxu0 0
      %1704 = vmatprep.mubr.bf16.mxu0 0
      %1705 = vmatmul.mubr.bf16.gmra.mxu0 %v923
      %v1706 = vpop.f32.mrf.mxu0
      %v1707 = vadd.f32 %v1666, %v1706
      %v1708 = vpop.f32.mrf.mxu0
      %v1709 = vpop.f32.mrf.mxu0
      %v1710 = vadd.f32 %v1669, %v1709
      %v1711 = vpop.f32.mrf.mxu0
      %1712 = vdwg.mxu0
      %v1713 = vmax.f32 %v1707, 0.0
      %v1714 = vmax.f32 %v1710, 0.0
      %v1715 = vadd.f32 %v1713, %v1714
      %v1716 = vrot.slane %v1715, 4
      %v1717 = vadd.f32 %v1715, %v1716
      %v1718 = vrot.slane %v1717, 2
      %v1719 = vadd.f32 %v1717, %v1718
      %v1720 = vrot.slane %v1719, 1
      %v1721 = vadd.f32 %v1719, %v1720
      %v1722 = vrcp.pop 16.0
      %v1723 = vmul.f32 %v1721, %v1722
      %v1724 = vld [vmem:[%s6] sm:$0xff]
      %v1725 = vld [vmem:[%s6 + $0x8] sm:$0xff]
      %v1726 = vld [vmem:[%s6 + $0x10] sm:$0xff]
      %v1727 = vld [vmem:[%s6 + $0x18] sm:$0xff]
      %v1728 = vld [vmem:[%s6 + $0x20] sm:$0xff]
      %v1729 = vld [vmem:[%s6 + $0x28] sm:$0xff]
      %v1730 = vld [vmem:[%s6 + $0x30] sm:$0xff]
      %v1731 = vld [vmem:[%s6 + $0x38] sm:$0xff]
      %v1732 = vld [vmem:[%s6 + $0x40] sm:$0xff]
      %v1733 = vld [vmem:[%s6 + $0x48] sm:$0xff]
      %v1734 = vld [vmem:[%s6 + $0x50] sm:$0xff]
      %v1735 = vld [vmem:[%s6 + $0x58] sm:$0xff]
      %v1736 = vld [vmem:[%s6 + $0x60] sm:$0xff]
      %v1737 = vld [vmem:[%s6 + $0x68] sm:$0xff]
      %v1738 = vld [vmem:[%s6 + $0x70] sm:$0xff]
      %v1739 = vld [vmem:[%s6 + $0x78] sm:$0xff]
      %v1740 = vld [vmem:[%s7] sm:$0x1]
      %1741 = vmatprep.subr.mxu0 0.0
      %1742 = vmatpush1.msra.mxu0 %v1739
      %1743 = vmatprep.subr.mxu0 0.0
      %1744 = vmatpush1.msra.mxu0 %v1738
      %1745 = vmatprep.subr.mxu0 0.0
      %1746 = vmatpush1.msra.mxu0 %v1737
      %1747 = vmatprep.subr.mxu0 0.0
      %1748 = vmatpush1.msra.mxu0 %v1736
      %1749 = vmatprep.subr.mxu0 0.0
      %1750 = vmatpush1.msra.mxu0 %v1735
      %1751 = vmatprep.subr.mxu0 0.0
      %1752 = vmatpush1.msra.mxu0 %v1734
      %1753 = vmatprep.subr.mxu0 0.0
      %1754 = vmatpush1.msra.mxu0 %v1733
      %1755 = vmatprep.subr.mxu0 0.0
      %1756 = vmatpush1.msra.mxu0 %v1732
      %1757 = vmatprep.subr.mxu0 0.0
      %1758 = vmatpush1.msra.mxu0 %v1731
      %1759 = vmatprep.subr.mxu0 0.0
      %1760 = vmatpush1.msra.mxu0 %v1730
      %1761 = vmatprep.subr.mxu0 0.0
      %1762 = vmatpush1.msra.mxu0 %v1729
      %1763 = vmatprep.subr.mxu0 0.0
      %1764 = vmatpush1.msra.mxu0 %v1728
      %1765 = vmatprep.subr.mxu0 0.0
      %1766 = vmatpush1.msra.mxu0 %v1727
      %1767 = vmatprep.subr.mxu0 0.0
      %1768 = vmatpush1.msra.mxu0 %v1726
      %1769 = vmatprep.subr.mxu0 0.0
      %1770 = vmatpush1.msra.mxu0 %v1725
      %1771 = vmatprep.subr.mxu0 0.0
      %1772 = vmatpush1.msra.mxu0 %v1724
      %1773 = vmatprep.subr.mxu0 0.0
      %1774 = vmatpush2.msra.mxu0 0.0
      %1775 = vmatprep.subr.mxu0 0.0
      %1776 = vmatpush2.msra.mxu0 0.0
      %1777 = vmatprep.subr.mxu0 0.0
      %1778 = vmatpush2.msra.mxu0 0.0
      %1779 = vmatprep.subr.mxu0 0.0
      %1780 = vmatpush2.msra.mxu0 0.0
      %1781 = vmatprep.subr.mxu0 0.0
      %1782 = vmatpush2.msra.mxu0 0.0
      %1783 = vmatprep.subr.mxu0 0.0
      %1784 = vmatpush2.msra.mxu0 0.0
      %1785 = vmatprep.subr.mxu0 0.0
      %1786 = vmatpush2.msra.mxu0 0.0
      %1787 = vmatprep.subr.mxu0 0.0
      %1788 = vmatpush2.msra.mxu0 0.0
      %1789 = vmatprep.subr.mxu0 0.0
      %1790 = vmatpush2.msra.mxu0 0.0
      %1791 = vmatprep.subr.mxu0 0.0
      %1792 = vmatpush2.msra.mxu0 0.0
      %1793 = vmatprep.subr.mxu0 0.0
      %1794 = vmatpush2.msra.mxu0 0.0
      %1795 = vmatprep.subr.mxu0 0.0
      %1796 = vmatpush2.msra.mxu0 0.0
      %1797 = vmatprep.subr.mxu0 0.0
      %1798 = vmatpush2.msra.mxu0 0.0
      %1799 = vmatprep.subr.mxu0 0.0
      %1800 = vmatpush2.msra.mxu0 0.0
      %1801 = vmatprep.subr.mxu0 0.0
      %1802 = vmatpush2.msra.mxu0 0.0
      %1803 = vmatprep.subr.mxu0 0.0
      %1804 = vmatpush2.msra.mxu0 0.0
      %1805 = vmatprep.mubr.f32.mxu0 0.0
      %1806 = vmatmul.mubr.f32.gmra.mxu0 %v1723
      %v1807 = vpop.f32.mrf.mxu0
      %v1808 = vadd.f32 %v1740, %v1807
      %v1809 = vpop.f32.mrf.mxu0
      %1810 = vdwg.mxu0
      %v1811 = vmax.f32 %v1808, 0.0
      %v1812 = vld [vmem:[%s8] sm:$0xff]
      %v1813 = vld [vmem:[%s8 + $0x8] sm:$0xff]
      %v1814 = vld [vmem:[%s9] sm:$0x1]
      %vm1815 = vcmask 130048
      %v1817 = vsel %vm1815, %v1811, 0
      %1819 = vmatprep.subr.mxu0 0.0
      %1820 = vmatpush1.msra.mxu0 0.0
      %1821 = vmatprep.subr.mxu0 0.0
      %1822 = vmatpush1.msra.mxu0 0.0
      %1823 = vmatprep.subr.mxu0 0.0
      %1824 = vmatpush1.msra.mxu0 0.0
      %1825 = vmatprep.subr.mxu0 0.0
      %1826 = vmatpush1.msra.mxu0 0.0
      %1827 = vmatprep.subr.mxu0 0.0
      %1828 = vmatpush1.msra.mxu0 0.0
      %1829 = vmatprep.subr.mxu0 0.0
      %1830 = vmatpush1.msra.mxu0 0.0
      %1831 = vmatprep.subr.mxu0 0.0
      %1832 = vmatpush1.msra.mxu0 0.0
      %1833 = vmatprep.subr.mxu0 0.0
      %1834 = vmatpush1.msra.mxu0 0.0
      %1835 = vmatprep.subr.mxu0 0.0
      %1836 = vmatpush1.msra.mxu0 0.0
      %1837 = vmatprep.subr.mxu0 0.0
      %1838 = vmatpush1.msra.mxu0 0.0
      %1839 = vmatprep.subr.mxu0 0.0
      %1840 = vmatpush1.msra.mxu0 0.0
      %1841 = vmatprep.subr.mxu0 0.0
      %1842 = vmatpush1.msra.mxu0 0.0
      %1843 = vmatprep.subr.mxu0 0.0
      %1844 = vmatpush1.msra.mxu0 0.0
      %1845 = vmatprep.subr.mxu0 0.0
      %1846 = vmatpush1.msra.mxu0 0.0
      %1847 = vmatprep.subr.mxu0 0.0
      %1848 = vmatpush1.msra.mxu0 %v1813
      %1849 = vmatprep.subr.mxu0 0.0
      %1850 = vmatpush1.msra.mxu0 %v1812
      %1851 = vmatprep.subr.mxu0 0.0
      %1852 = vmatpush2.msra.mxu0 0.0
      %1853 = vmatprep.subr.mxu0 0.0
      %1854 = vmatpush2.msra.mxu0 0.0
      %1855 = vmatprep.subr.mxu0 0.0
      %1856 = vmatpush2.msra.mxu0 0.0
      %1857 = vmatprep.subr.mxu0 0.0
      %1858 = vmatpush2.msra.mxu0 0.0
      %1859 = vmatprep.subr.mxu0 0.0
      %1860 = vmatpush2.msra.mxu0 0.0
      %1861 = vmatprep.subr.mxu0 0.0
      %1862 = vmatpush2.msra.mxu0 0.0
      %1863 = vmatprep.subr.mxu0 0.0
      %1864 = vmatpush2.msra.mxu0 0.0
      %1865 = vmatprep.subr.mxu0 0.0
      %1866 = vmatpush2.msra.mxu0 0.0
      %1867 = vmatprep.subr.mxu0 0.0
      %1868 = vmatpush2.msra.mxu0 0.0
      %1869 = vmatprep.subr.mxu0 0.0
      %1870 = vmatpush2.msra.mxu0 0.0
      %1871 = vmatprep.subr.mxu0 0.0
      %1872 = vmatpush2.msra.mxu0 0.0
      %1873 = vmatprep.subr.mxu0 0.0
      %1874 = vmatpush2.msra.mxu0 0.0
      %1875 = vmatprep.subr.mxu0 0.0
      %1876 = vmatpush2.msra.mxu0 0.0
      %1877 = vmatprep.subr.mxu0 0.0
      %1878 = vmatpush2.msra.mxu0 0.0
      %1879 = vmatprep.subr.mxu0 0.0
      %1880 = vmatpush2.msra.mxu0 0.0
      %1881 = vmatprep.subr.mxu0 0.0
      %1882 = vmatpush2.msra.mxu0 0.0
      %1883 = vmatprep.mubr.f32.mxu0 0.0
      %1884 = vmatmul.mubr.f32.gmra.mxu0 %v1817
      %v1885 = vpop.f32.mrf.mxu0
      %v1886 = vadd.f32 %v1814, %v1885
      %v1887 = vpop.f32.mrf.mxu0
      %1888 = vdwg.mxu0
      %v1889 = vxor.u32 %v1886, 2147483648
      %v1890 = vmul.f32 %v1889, 1.442695
      %v1891 = vpow.pop %v1890
      %v1892 = vadd.f32 %v1891, 1.0
      %v1893 = vrcp.pop %v1892
      %v1894 = vmul.f32 1.0, %v1893
      %v1895 = vlaneseq
      %v1896 = vshrl.u32 %v1895, 7
      %v1897 = vsub.s32 0, %v1896
      %v1898 = vrot.slane %v1894, %v1897
      %v1899 = vmul.f32 %v1713, %v1898
      %v1900 = vmul.f32 %v1714, %v1898
      %v1901 = vpack.c.bf16 %v1900, %v1899
      %v1902 = vld [vmem:[%s515] sm:$0xf]
      %v1903 = vld [vmem:[%s515 + $0x4] sm:$0xf]
      %v1906 = vunpack.c.l.b16 %v1902
      %v1907 = vunpack.c.l.b16 %v1903
      %v1908 = vpack.c.b16 %v1907, %v1906
      %v1909 = vld [vmem:[%s11] sm:$0xf]
      %v1910 = vld [vmem:[%s11 + $0x4] sm:$0xf]
      %v1911 = vld [vmem:[%s11 + $0x8] sm:$0xf]
      %v1912 = vld [vmem:[%s11 + $0xc] sm:$0xf]
      %v1913 = vld [vmem:[%s11 + $0x10] sm:$0xf]
      %v1914 = vld [vmem:[%s11 + $0x14] sm:$0xf]
      %v1915 = vld [vmem:[%s11 + $0x18] sm:$0xf]
      %v1916 = vld [vmem:[%s11 + $0x1c] sm:$0xf]
      %v1917 = vld [vmem:[%s11 + $0x20] sm:$0xf]
      %v1918 = vld [vmem:[%s11 + $0x24] sm:$0xf]
      %v1919 = vld [vmem:[%s11 + $0x28] sm:$0xf]
      %v1920 = vld [vmem:[%s11 + $0x2c] sm:$0xf]
      %v1921 = vld [vmem:[%s11 + $0x30] sm:$0xf]
      %v1922 = vld [vmem:[%s11 + $0x34] sm:$0xf]
      %v1923 = vld [vmem:[%s11 + $0x38] sm:$0xf]
      %v1924 = vld [vmem:[%s11 + $0x3c] sm:$0xf]
      %v1925 = vld [vmem:[%s11 + $0x40] sm:$0xf]
      %v1926 = vld [vmem:[%s11 + $0x44] sm:$0xf]
      %v1927 = vld [vmem:[%s11 + $0x48] sm:$0xf]
      %v1928 = vld [vmem:[%s11 + $0x4c] sm:$0xf]
      %v1929 = vld [vmem:[%s11 + $0x50] sm:$0xf]
      %v1930 = vld [vmem:[%s11 + $0x54] sm:$0xf]
      %v1931 = vld [vmem:[%s11 + $0x58] sm:$0xf]
      %v1932 = vld [vmem:[%s11 + $0x5c] sm:$0xf]
      %v1933 = vld [vmem:[%s12] sm:$0x1]
      %v1935 = vlaneseq
      %v1936 = vshrl.u32 %v1935, 7
      %v1937 = vsub.s32 0, %v1936
      %v1938 = vrot.slane %v1933, %v1937
      %v1964 = vunpack.c.l.b16 %v1909
      %v1965 = vunpack.c.l.b16 %v1910
      %v1966 = vunpack.c.l.b16 %v1911
      %v1967 = vunpack.c.l.b16 %v1912
      %v1968 = vunpack.c.l.b16 %v1913
      %v1969 = vunpack.c.l.b16 %v1914
      %v1970 = vunpack.c.l.b16 %v1915
      %v1971 = vunpack.c.l.b16 %v1916
      %v1972 = vunpack.c.l.b16 %v1917
      %v1973 = vunpack.c.l.b16 %v1918
      %v1974 = vunpack.c.l.b16 %v1919
      %v1975 = vunpack.c.l.b16 %v1920
      %v1976 = vunpack.c.l.b16 %v1921
      %v1977 = vunpack.c.l.b16 %v1922
      %v1978 = vunpack.c.l.b16 %v1923
      %v1979 = vunpack.c.l.b16 %v1924
      %v1980 = vunpack.c.l.b16 %v1925
      %v1981 = vunpack.c.l.b16 %v1926
      %v1982 = vunpack.c.l.b16 %v1927
      %v1983 = vunpack.c.l.b16 %v1928
      %v1984 = vunpack.c.l.b16 %v1929
      %v1985 = vunpack.c.l.b16 %v1930
      %v1986 = vunpack.c.l.b16 %v1931
      %v1987 = vunpack.c.l.b16 %v1932
      %v1988 = vpack.c.b16 %v1965, %v1964
      %v1989 = vpack.c.b16 %v1967, %v1966
      %v1990 = vpack.c.b16 %v1969, %v1968
      %v1991 = vpack.c.b16 %v1971, %v1970
      %v1992 = vpack.c.b16 %v1973, %v1972
      %v1993 = vpack.c.b16 %v1975, %v1974
      %v1994 = vpack.c.b16 %v1977, %v1976
      %v1995 = vpack.c.b16 %v1979, %v1978
      %v1996 = vpack.c.b16 %v1981, %v1980
      %v1997 = vpack.c.b16 %v1983, %v1982
      %v1998 = vpack.c.b16 %v1985, %v1984
      %v1999 = vpack.c.b16 %v1987, %v1986
      %vm2012 = vcmask 523264
      %v2014 = vsel %vm2012, %v1908, 0
      %2016 = vmatprep.subr.bf16.mxu0 0
      %2017 = vmatpush1.bf16.msra.mxu0 %v1995
      %2018 = vmatprep.subr.bf16.mxu0 0
      %2019 = vmatpush1.bf16.msra.mxu0 %v1994
      %2020 = vmatprep.subr.bf16.mxu0 0
      %2021 = vmatpush1.bf16.msra.mxu0 %v1993
      %2022 = vmatprep.subr.bf16.mxu0 0
      %2023 = vmatpush1.bf16.msra.mxu0 %v1992
      %2024 = vmatprep.subr.bf16.mxu0 0
      %2025 = vmatpush1.bf16.msra.mxu0 %v1991
      %2026 = vmatprep.subr.bf16.mxu0 0
      %2027 = vmatpush1.bf16.msra.mxu0 %v1990
      %2028 = vmatprep.subr.bf16.mxu0 0
      %2029 = vmatpush1.bf16.msra.mxu0 %v1989
      %2030 = vmatprep.subr.bf16.mxu0 0
      %2031 = vmatpush1.bf16.msra.mxu0 %v1988
      %2032 = vmatprep.subr.bf16.mxu0 0
      %2033 = vmatpush2.bf16.msra.mxu0 0
      %2034 = vmatprep.subr.bf16.mxu0 0
      %2035 = vmatpush2.bf16.msra.mxu0 0
      %2036 = vmatprep.subr.bf16.mxu0 0
      %2037 = vmatpush2.bf16.msra.mxu0 0
      %2038 = vmatprep.subr.bf16.mxu0 0
      %2039 = vmatpush2.bf16.msra.mxu0 0
      %2040 = vmatprep.subr.bf16.mxu0 0
      %2041 = vmatpush2.bf16.msra.mxu0 %v1999
      %2042 = vmatprep.subr.bf16.mxu0 0
      %2043 = vmatpush2.bf16.msra.mxu0 %v1998
      %2044 = vmatprep.subr.bf16.mxu0 0
      %2045 = vmatpush2.bf16.msra.mxu0 %v1997
      %2046 = vmatprep.subr.bf16.mxu0 0
      %2047 = vmatpush2.bf16.msra.mxu0 %v1996
      %2048 = vmatprep.mubr.bf16.mxu0 %v2014
      %2049 = vmatmul.mubr.bf16.gmra.mxu0 %v1901
      %v2050 = vpop.f32.mrf.mxu0
      %v2051 = vadd.f32 %v1938, %v2050
      %v2052 = vpop.f32.mrf.mxu0
      %v2053 = vpop.f32.mrf.mxu0
      %v2054 = vadd.f32 %v1938, %v2053
      %v2055 = vpop.f32.mrf.mxu0
      %2056 = vdwg.mxu0
      %v2057 = vmax.f32 %v2051, 0.0
      %v2058 = vmax.f32 %v2054, 0.0
      %v2059 = vpack.c.bf16 %v2058, %v2057
      %v2061 = vunpack.c.l.b16 %v2059
      %v2062 = vunpack.c.h.b16 %v2059
      %v2063 = vpack.c.b16 %v2061, %v2061
      %v2064 = vpack.c.b16 %v2062, %v2062
      %2067 = vst [vmem:[%s520] sm:$0xf] %v2063
      %2068 = vst [vmem:[%s520 + $0x4] sm:$0xf] %v2064
      %p2069 = scmp.lt.s32.totalorder %s24, 1
      %s2070 = scalar_select %p2069, %s24, 1
      %s2071 = smul.addr %s2070, 2
      %s2072 = smul.addr %s2071, 4
      %s2073 = scalar_lea.vmem %s13, %s2072
      // Predicated region
      $region73: #{block_forward_pallas.3} parent=71 // pred_check
        %p2074 = pneg %p340
      $region74: #{block_forward_pallas.3} parent=71 // pred_check_branch
        %2076 = sbr.rel (%p2074) target = $region76
      $region75: #{block_forward_pallas.3} parent=71 // pred_region
        _
      $region76: #{block_forward_pallas.3} parent=71 // pred_fallthru
        _
    $region72: #{block_forward_pallas.3} parent=5 // pred_fallthru
      _
    %p2077 = scmp.le.s32.totalorder 2, %s19
    // Predicated region
    $region77: #{block_forward_pallas.3} parent=5 // pred_check
      %p2078 = pneg %p2077
    $region78: #{block_forward_pallas.3} parent=5 // pred_check_branch
      %2080 = sbr.rel (%p2078) target = $region80
    $region79: #{block_forward_pallas.3} parent=5 // pred_region
      %s2081 = ssub.s32 %s19, 2
      // Predicated region
      $region81: #{block_forward_pallas.3} parent=79 // pred_check
        %p2082 = pneg %p346
      $region82: #{block_forward_pallas.3} parent=79 // pred_check_branch
        %2084 = sbr.rel (%p2082) target = $region84
      $region83: #{block_forward_pallas.3} parent=79 // pred_region
        %p2085 = scmp.lt.s32.totalorder %s25, 1
        %s2086 = scalar_select %p2085, %s25, 1
        %s2087 = smul.addr %s2086, 2
        %s2088 = smul.addr %s2087, 4
        %s2089 = scalar_lea.vmem %s13, %s2088
      $region84: #{block_forward_pallas.3} parent=79 // pred_fallthru
        _
    $region80: #{block_forward_pallas.3} parent=5 // pred_fallthru
      _
  $region6: #{block_forward_pallas.3} parent=0 // loop_footer
    %s23 = sadd.s32 1, %s19
  $region7: #{block_forward_pallas.3} parent=0 // loop_footer_branch
    %18 = sbr.rel target = $region3
  $region8: #{block_forward_pallas.3} parent=0 // loop_exit
    _

</llo_original>
